<compile_context>
chip_gen: v7x
topology: tpu7x:2x2x1
jax: 0.10.0
libtpu: 0.0.40
codegen_flags: <defaults>
</compile_context>

<pallas_src>
import functools

import jax
import jax.numpy as jnp
from jax.experimental import pallas as pl
from jax.experimental.pallas import tpu as pltpu


def _round_up(x, m):
    return (x + m - 1) // m * m


# ----------------------------------------------------------------------------
# Pallas kernel: fused phi-aggregation + psi + gamma for one (batch, i-tile)
# ----------------------------------------------------------------------------
def _calc_scale_kernel(
    num_ref,    # SMEM [B] int32  : number of valid atoms per batch (scalar prefetch)
    dx_ref,     # [T, N]  bf16    : |x_i - x_j| for this i-tile
    dz_ref,     # [T, N]  bf16    : |z_i - z_j| for this i-tile
    ai_ref,     # [T, H]  f32     : phi layer-1 i-term + bias  (p_i @ W_i + br1)
    bjt_ref,    # [H, N]  f32     : phi layer-1 j-term, j on lanes; masked j = -1e9
    pw_ref,     # [T, F]  f32     : processed pointwise features (psi input)
    wdx_ref,    # [H, 1]  f32
    wdz_ref,    # [H, 1]  f32
    wr2_ref,    # [H, F]  f32
    br2_ref,    # [1, F]  f32
    wp1_ref,    # [F, H]  f32
    bp1_ref,    # [1, H]  f32
    wp2_ref,    # [H, F]  f32
    bp2_ref,    # [1, F]  f32
    ws1_ref,    # [F, H]  f32
    bs1_ref,    # [1, H]  f32
    ws2_ref,    # [H, 1]  f32
    bs2_ref,    # [1, 1]  f32
    out_ref,    # [T, 1]  f32
    acc_ref,    # VMEM scratch [T, H] f32
    *,
    row_chunk,
):
    tile_i = acc_ref.shape[0]
    n_blocks = tile_i // row_chunk

    # per-batch scalars from SMEM (prefetched)
    n_valid = num_ref[pl.program_id(0)]
    nf = n_valid.astype(jnp.float32)
    gate = jnp.where(n_valid > 0, 1.0, 0.0).astype(jnp.float32)
    inv = gate / jnp.maximum(nf, 1.0)

    wdx = wdx_ref[...][None, :, :]          # [1, H, 1]
    wdz = wdz_ref[...][None, :, :]          # [1, H, 1]

    # ---- relative branch (phi layer-1 + masked sum over j), row-chunked -----
    # pre[t, h, j] = dx*w_dx + dz*w_dz + Ai[t,h] + BjT[h,j]; masked j have
    # BjT = -1e9 so ReLU zeroes them -> neighbour mask is free.
    def phi_rows(rs):
        dx_c = dx_ref[pl.ds(rs, row_chunk), :].astype(jnp.float32)[:, None, :]
        dz_c = dz_ref[pl.ds(rs, row_chunk), :].astype(jnp.float32)[:, None, :]
        ai_c = ai_ref[pl.ds(rs, row_chunk), :][:, :, None]            # [rc,H,1]
        bj = bjt_ref[...][None, :, :]                                  # [1,H,N]
        pre = dx_c * wdx + dz_c * wdz + ai_c + bj                      # [rc,H,N]
        acc_ref[pl.ds(rs, row_chunk), :] = jnp.sum(
            jnp.maximum(pre, 0.0), axis=-1)                            # [rc,H]

    if n_blocks == 1:
        phi_rows(0)
    else:
        def body(r, carry):
            phi_rows(pl.multiple_of(r * row_chunk, row_chunk))
            return carry
        jax.lax.fori_loop(0, n_blocks, body, 0)

    # masked mean hoisted before phi's (linear) second layer; gate keeps the
    # fully-masked case at exactly 0 instead of br2.
    rel_agg = (jnp.dot(acc_ref[...] * inv, wr2_ref[...],
                       preferred_element_type=jnp.float32)
               + br2_ref[...] * gate)                                  # [T, F]

    # ---- pointwise branch (psi) ---------------------------------------------
    hp = jnp.maximum(
        jnp.dot(pw_ref[...], wp1_ref[...], preferred_element_type=jnp.float32)
        + bp1_ref[...], 0.0)                                           # [T, H]
    pw_out = (jnp.dot(hp, wp2_ref[...], preferred_element_type=jnp.float32)
              + bp2_ref[...])                                          # [T, F]

    # ---- scale head (gamma) ---------------------------------------------------
    s = pw_out + rel_agg
    hs = jnp.maximum(
        jnp.dot(s, ws1_ref[...], preferred_element_type=jnp.float32)
        + bs1_ref[...], 0.0)                                           # [T, H]
    out_ref[...] = (jnp.dot(hs, ws2_ref[...], preferred_element_type=jnp.float32)
                    + bs2_ref[...]).astype(out_ref.dtype)              # [T, 1]


# ----------------------------------------------------------------------------
# VMEM sizing (generation-aware, padding-aware)
# ----------------------------------------------------------------------------
def _pick_vmem_limit(tile_i, n, hidden, feat, row_chunk):
    def padded(shape, itemsize):
        dims = list(shape)
        dims[-1] = _round_up(dims[-1], 128)
        if len(dims) >= 2:
            sub = 8 * (4 // itemsize) if itemsize in (2, 4) else 8
            dims[-2] = _round_up(dims[-2], sub)
        size = itemsize
        for d in dims:
            size *= d
        return size

    blocks = (2 * padded((tile_i, n), 2)          # dx, dz (bf16)
              + padded((tile_i, hidden), 4)       # Ai
              + padded((hidden, n), 4)            # BjT
              + padded((tile_i, feat), 4)         # pointwise
              + padded((tile_i, 1), 4))           # out
    weights = 256 << 10
    temps = 4 * padded((row_chunk, hidden, n), 4) + padded((tile_i, hidden), 4)
    est = 2 * (blocks + weights) + temps          # x2: double-buffered pipeline

    try:
        cap = int(pltpu.get_tpu_info().vmem_capacity_bytes) * 3 // 4
    except Exception:                             # pragma: no cover
        cap = 48 << 20                            # safe on v5e / v6e / v7x
    return int(min(cap, max(32 << 20, 2 * est)))


# ----------------------------------------------------------------------------
# Wrapper: fold projections, precompute per-atom terms, tile & call the kernel
# ----------------------------------------------------------------------------
def calc_scale_pallas(masked_elements, pointwise_in, dx, dz, params,
                      *, tile_i=None, row_chunk=None):
    """masked_elements [B,N] bool; pointwise_in [B,N,Dp]; dx,dz [B,N,N] -> [B,N,1]."""
    f32 = jnp.float32
    B, N, dp = pointwise_in.shape

    # Fold the (stand-in, linear) _process_features projection into phi layer-1.
    w_rel = params["proj_rel"].astype(f32) @ params["wr1"].astype(f32)   # [Dr, H]
    w_dx, w_dz = w_rel[0:1], w_rel[1:2]                                  # [1, H]
    w_pi, w_pj = w_rel[2:2 + dp], w_rel[2 + dp:]                         # [Dp, H]
    hidden = w_rel.shape[1]

    ai = pointwise_in.astype(f32) @ w_pi + params["br1"].astype(f32)     # [B,N,H]
    bj = pointwise_in.astype(f32) @ w_pj                                 # [B,N,H]
    bjt = jnp.swapaxes(bj, 1, 2)                                         # [B,H,N]
    # neighbour mask folded into the j-term: masked j -> -1e9 -> ReLU -> 0
    bjt = jnp.where(masked_elements[:, None, :], f32(-1e9), bjt).astype(f32)

    pointwise = (pointwise_in.astype(f32) @ params["proj_pw"].astype(f32))  # [B,N,F]
    feat = pointwise.shape[-1]

    num_valid = jnp.sum(jnp.logical_not(masked_elements), axis=-1).astype(jnp.int32)

    # ---- tiling ----
    if tile_i is None:
        tile_i = min(128, _round_up(N, 8))
    tile_i = max(8, _round_up(int(tile_i), 8))
    ni_pad = _round_up(N, tile_i)
    ni = ni_pad // tile_i
    if row_chunk is None:
        row_chunk = tile_i if tile_i * hidden * N * 4 <= (4 << 20) else 8
    row_chunk = min(max(8, _round_up(int(row_chunk), 8)), tile_i)
    while tile_i % row_chunk:
        row_chunk -= 8

    # ---- pad the i axis; the O(N^2) streams are produced directly in bf16
    # (cast fuses with the producer under jit; no standalone cast pass). ----
    def _pad_rows(x, rows):
        if x.shape[1] == rows:
            return x
        pad = [(0, 0)] * x.ndim
        pad[1] = (0, rows - x.shape[1])
        return jnp.pad(x, pad)

    dx_p = _pad_rows(dx.astype(jnp.bfloat16), ni_pad)
    dz_p = _pad_rows(dz.astype(jnp.bfloat16), ni_pad)
    ai_p = _pad_rows(ai.astype(f32), ni_pad)
    pw_p = _pad_rows(pointwise.astype(f32), ni_pad)

    weights = (
        w_dx.T.astype(f32), w_dz.T.astype(f32),                  # [H,1], [H,1]
        params["wr2"].astype(f32), params["br2"].astype(f32),
        params["wp1"].astype(f32), params["bp1"].astype(f32),
        params["wp2"].astype(f32), params["bp2"].astype(f32),
        params["ws1"].astype(f32), params["bs1"].astype(f32),
        params["ws2"].astype(f32), params["bs2"].astype(f32),
    )

    def _i_map(b, it, *_):
        return (b, it, 0)

    def _b_map(b, it, *_):
        return (b, 0, 0)

    def _w_map(b, it, *_):
        return (0, 0)

    in_specs = [
        pl.BlockSpec((None, tile_i, N), _i_map),       # dx
        pl.BlockSpec((None, tile_i, N), _i_map),       # dz
        pl.BlockSpec((None, tile_i, hidden), _i_map),  # Ai
        pl.BlockSpec((None, hidden, N), _b_map),       # BjT (per-batch, i-invariant)
        pl.BlockSpec((None, tile_i, feat), _i_map),    # pointwise
    ] + [pl.BlockSpec(w.shape, _w_map) for w in weights]
    # TODO(synk): a lane-dense [B, N] output slab would avoid 1-lane masked
    # stores; kept [B, N, 1] to match the module's return shape (bytes are tiny).
    out_spec = pl.BlockSpec((None, tile_i, 1), _i_map)

    vmem_limit = _pick_vmem_limit(tile_i, N, hidden, feat, row_chunk)

    kernel = functools.partial(_calc_scale_kernel, row_chunk=row_chunk)
    out = pl.pallas_call(
        kernel,
        out_shape=jax.ShapeDtypeStruct((B, ni_pad, 1), f32),
        grid_spec=pltpu.PrefetchScalarGridSpec(
            num_scalar_prefetch=1,
            grid=(B, ni),
            in_specs=in_specs,
            out_specs=out_spec,
            scratch_shapes=[pltpu.VMEM((tile_i, hidden), f32)]),
        compiler_params=pltpu.CompilerParams(
            dimension_semantics=("parallel", "parallel"),
            vmem_limit_bytes=vmem_limit),
    )(num_valid, dx_p, dz_p, ai_p, bjt, pw_p, *weights)
    return out[:, :N, :]


# ----------------------------------------------------------------------------
# Stand-in SO(3)-invariant feature construction (abstract in the reference)
# ----------------------------------------------------------------------------
def _build_invariant_inputs(z_untransformed, x_features, x_coords, x_velocs):
    # TODO(synk): stand-in for the abstract basis.get_equivariant_features_and_basis.
    cn = jnp.linalg.norm(x_coords, axis=-1, keepdims=True)
    vn = jnp.linalg.norm(x_velocs, axis=-1, keepdims=True)
    zn = jnp.linalg.norm(z_untransformed, axis=-1, keepdims=True)
    pointwise_in = jnp.concatenate([x_features, cn, vn, zn], axis=-1)     # [B,N,Dp]
    dx = jnp.linalg.norm(x_coords[:, :, None] - x_coords[:, None], axis=-1)
    dz = jnp.linalg.norm(z_untransformed[:, :, None] - z_untransformed[:, None],
                         axis=-1)
    return pointwise_in, dx, dz


def dense_invariant_scale_forward(adj_list, z_untransformed, x_features,
                                  x_coords, x_velocs, masked_elements, params,
                                  *, tile_i=None, row_chunk=None):
    del adj_list  # dense module: adjacency unused
    pointwise_in, dx, dz = _build_invariant_inputs(
        z_untransformed, x_features, x_coords, x_velocs)
    return calc_scale_pallas(masked_elements, pointwise_in, dx, dz, params,
                             tile_i=tile_i, row_chunk=row_chunk)


# ----------------------------------------------------------------------------
# Plain-JAX reference (unfused module math; dx/dz bf16-quantized like the kernel)
# ----------------------------------------------------------------------------
def calc_scale_ref(masked_elements, pointwise_in, dx, dz, params):
    p = {k: jnp.asarray(v, jnp.float32) for k, v in params.items()}
    valid = jnp.logical_not(masked_elements).astype(jnp.float32)          # [B,N]
    dxq = dx.astype(jnp.bfloat16).astype(jnp.float32)
    dzq = dz.astype(jnp.bfloat16).astype(jnp.float32)
    B, N, dp = pointwise_in.shape
    pi = jnp.broadcast_to(pointwise_in[:, :, None, :], (B, N, N, dp))
    pj = jnp.broadcast_to(pointwise_in[:, None, :, :], (B, N, N, dp))
    rel_in = jnp.concatenate([dxq[..., None], dzq[..., None], pi, pj], axis=-1)
    relative = rel_in @ p["proj_rel"]                                     # [B,N,N,F]
    pointwise = pointwise_in @ p["proj_pw"]                               # [B,N,F]

    num = valid.sum(-1)                                                   # [B]
    # TODO(synk): the original module divides by zero (NaN) for fully-masked
    # systems; both kernel and reference use the "relative term -> 0" convention.
    inv = jnp.where(num > 0, 1.0 / jnp.maximum(num, 1.0), 0.0)

    phi = jnp.maximum(relative @ p["wr1"] + p["br1"], 0.0) @ p["wr2"] + p["br2"]
    phi = phi * valid[:, None, :, None]
    agg = phi.sum(-2) * inv[:, None, None]                                # [B,N,F]
    psi = jnp.maximum(pointwise @ p["wp1"] + p["bp1"], 0.0) @ p["wp2"] + p["bp2"]
    s = psi + agg
    return jnp.maximum(s @ p["ws1"] + p["bs1"], 0.0) @ p["ws2"] + p["bs2"]


# ----------------------------------------------------------------------------
# Parameter construction (torch.nn.Linear-style uniform init)
# ----------------------------------------------------------------------------
# TODO(synk): MLP class definition not provided; assumed Linear -> ReLU -> Linear.
def _make_linear(key, fan_in, fan_out):
    k1, k2 = jax.random.split(key)
    lim = 1.0 / jnp.sqrt(jnp.float32(fan_in))
    w = jax.random.uniform(k1, (fan_in, fan_out), jnp.float32, -lim, lim)
    b = jax.random.uniform(k2, (1, fan_out), jnp.float32, -lim, lim)
    return w, b


def init_params(key, in_feat, feat_dim, hidden_dim):
    dp = in_feat + 3
    dr = 2 + 2 * dp
    ks = jax.random.split(key, 8)
    params = {
        "proj_pw": jax.random.normal(ks[0], (dp, feat_dim), jnp.float32) * 0.1,
        "proj_rel": jax.random.normal(ks[1], (dr, feat_dim), jnp.float32) * 0.1,
    }
    params["wp1"], params["bp1"] = _make_linear(ks[2], feat_dim, hidden_dim)
    params["wp2"], params["bp2"] = _make_linear(ks[3], hidden_dim, feat_dim)
    params["wr1"], params["br1"] = _make_linear(ks[4], feat_dim, hidden_dim)
    params["wr2"], params["br2"] = _make_linear(ks[5], hidden_dim, feat_dim)
    params["ws1"], params["bs1"] = _make_linear(ks[6], feat_dim, hidden_dim)
    params["ws2"], params["bs2"] = _make_linear(ks[7], hidden_dim, 1)
    return params


# ----------------------------------------------------------------------------
if __name__ == "__main__":
    B = 2                       # batch
    N = 32                      # atoms per system
    IN_FEAT = 4                 # input_features_dim
    F = 32                      # output_features_dim
    H = 32                      # hidden_layers_dims = (32,)

    key = jax.random.PRNGKey(0)
    keys = jax.random.split(key, 5)
    x_features = jax.random.normal(keys[0], (B, N, IN_FEAT), jnp.float32)
    x_coords = jax.random.normal(keys[1], (B, N, 3), jnp.float32)
    x_velocs = jax.random.normal(keys[2], (B, N, 3), jnp.float32)
    z_untransformed = jax.random.normal(keys[3], (B, N, 3), jnp.float32)
    masked_elements = jnp.zeros((B, N), jnp.bool_).at[1, -3:].set(True)
    adj_list = None

    params = init_params(keys[4], IN_FEAT, F, H)

    # tile_i=16, row_chunk=8 -> exercises both the i-tile grid (2,2) and the
    # in-kernel row-chunk loop (2 chunks per tile).
    fwd = jax.jit(functools.partial(dense_invariant_scale_forward,
                                    tile_i=16, row_chunk=8))
    scale = fwd(adj_list, z_untransformed, x_features, x_coords, x_velocs,
                masked_elements, params)
    scale = jax.block_until_ready(scale)

    # Correctness check against the plain-JAX (unfused) module math.
    pointwise_in, dx, dz = _build_invariant_inputs(
        z_untransformed, x_features, x_coords, x_velocs)
    scale_ref = calc_scale_ref(masked_elements, pointwise_in, dx, dz, params)

    assert scale.shape == (B, N, 1), scale.shape
    max_err = jnp.max(jnp.abs(scale - scale_ref))
    assert jnp.allclose(scale, scale_ref, atol=2e-3, rtol=2e-3), max_err
    print("KERNEL_OK")
</pallas_src>

<mosaic_0001>
module attributes {stable_mosaic.version = 11 : i64} {
  func.func @_calc_scale_kernel(%arg0: i32, %arg1: i32, %arg2: memref<2xi32, #tpu.memory_space<smem>>, %arg3: memref<1x16x32xbf16, #tpu.memory_space<vmem>>, %arg4: memref<1x16x32xbf16, #tpu.memory_space<vmem>>, %arg5: memref<1x16x32xf32, #tpu.memory_space<vmem>>, %arg6: memref<1x32x32xf32, #tpu.memory_space<vmem>>, %arg7: memref<1x16x32xf32, #tpu.memory_space<vmem>>, %arg8: memref<32x1xf32, #tpu.memory_space<vmem>>, %arg9: memref<32x1xf32, #tpu.memory_space<vmem>>, %arg10: memref<32x32xf32, #tpu.memory_space<vmem>>, %arg11: memref<1x32xf32, #tpu.memory_space<vmem>>, %arg12: memref<32x32xf32, #tpu.memory_space<vmem>>, %arg13: memref<1x32xf32, #tpu.memory_space<vmem>>, %arg14: memref<32x32xf32, #tpu.memory_space<vmem>>, %arg15: memref<1x32xf32, #tpu.memory_space<vmem>>, %arg16: memref<32x32xf32, #tpu.memory_space<vmem>>, %arg17: memref<1x32xf32, #tpu.memory_space<vmem>>, %arg18: memref<32x1xf32, #tpu.memory_space<vmem>>, %arg19: memref<1x1xf32, #tpu.memory_space<vmem>>, %arg20: memref<1x16x1xf32, #tpu.memory_space<vmem>>, %arg21: memref<16x32xf32, #tpu.memory_space<vmem>>) attributes {dimension_semantics = [#tpu.dimension_semantics<parallel>, #tpu.dimension_semantics<parallel>], iteration_bounds = array<i64: 2, 2>, scalar_prefetch = 1 : i64, scratch_operands = 1 : i64, tpu.core_type = #tpu.core_type<tc>, window_params = [{transform_indices = @transform_0, window_bounds = array<i64: 1, 16, 32>}, {transform_indices = @transform_1, window_bounds = array<i64: 1, 16, 32>}, {transform_indices = @transform_2, window_bounds = array<i64: 1, 16, 32>}, {transform_indices = @transform_3, window_bounds = array<i64: 1, 32, 32>}, {transform_indices = @transform_4, window_bounds = array<i64: 1, 16, 32>}, {pipeline_mode = #tpu.pipeline_mode<synchronous>, transform_indices = @transform_5, window_bounds = array<i64: 32, 1>}, {pipeline_mode = #tpu.pipeline_mode<synchronous>, transform_indices = @transform_6, window_bounds = array<i64: 32, 1>}, {pipeline_mode = #tpu.pipeline_mode<synchronous>, transform_indices = @transform_7, window_bounds = array<i64: 32, 32>}, {pipeline_mode = #tpu.pipeline_mode<synchronous>, transform_indices = @transform_8, window_bounds = array<i64: 1, 32>}, {pipeline_mode = #tpu.pipeline_mode<synchronous>, transform_indices = @transform_9, window_bounds = array<i64: 32, 32>}, {pipeline_mode = #tpu.pipeline_mode<synchronous>, transform_indices = @transform_10, window_bounds = array<i64: 1, 32>}, {pipeline_mode = #tpu.pipeline_mode<synchronous>, transform_indices = @transform_11, window_bounds = array<i64: 32, 32>}, {pipeline_mode = #tpu.pipeline_mode<synchronous>, transform_indices = @transform_12, window_bounds = array<i64: 1, 32>}, {pipeline_mode = #tpu.pipeline_mode<synchronous>, transform_indices = @transform_13, window_bounds = array<i64: 32, 32>}, {pipeline_mode = #tpu.pipeline_mode<synchronous>, transform_indices = @transform_14, window_bounds = array<i64: 1, 32>}, {pipeline_mode = #tpu.pipeline_mode<synchronous>, transform_indices = @transform_15, window_bounds = array<i64: 32, 1>}, {pipeline_mode = #tpu.pipeline_mode<synchronous>, transform_indices = @transform_16, window_bounds = array<i64: 1, 1>}, {transform_indices = @transform_17, window_bounds = array<i64: 1, 16, 1>}]} {
    %0 = arith.index_cast %arg0 : i32 to index
    %1 = memref.load %arg2[%0] : memref<2xi32, #tpu.memory_space<smem>>
    %2 = arith.sitofp %1 : i32 to f32
    %c0_i32 = arith.constant 0 : i32
    %3 = arith.cmpi sgt, %1, %c0_i32 : i32
    %cst = arith.constant 1.000000e+00 : f32
    %cst_0 = arith.constant 0.000000e+00 : f32
    %4 = arith.select %3, %cst, %cst_0 : f32
    %cst_1 = arith.constant 1.000000e+00 : f32
    %5 = arith.maximumf %2, %cst_1 : f32
    %6 = arith.divf %4, %5 : f32
    %c0 = arith.constant 0 : index
    %c0_2 = arith.constant 0 : index
    %7 = vector.load %arg8[%c0, %c0_2] : memref<32x1xf32, #tpu.memory_space<vmem>>, vector<32x1xf32>
    %8 = vector.shape_cast %7 : vector<32x1xf32> to vector<1x32x1xf32>
    %c0_3 = arith.constant 0 : index
    %c0_4 = arith.constant 0 : index
    %9 = vector.load %arg9[%c0_3, %c0_4] : memref<32x1xf32, #tpu.memory_space<vmem>>, vector<32x1xf32>
    %10 = vector.shape_cast %9 : vector<32x1xf32> to vector<1x32x1xf32>
    %c0_i32_5 = arith.constant 0 : i32
    %c2_i32 = arith.constant 2 : i32
    %11 = arith.addi %c0_i32_5, %c2_i32 : i32
    %c1_i32 = arith.constant 1 : i32
    scf.for %arg22 = %c0_i32_5 to %11 step %c1_i32  : i32 {
      %c8_i32 = arith.constant 8 : i32
      %52 = arith.muli %arg22, %c8_i32 : i32
      %53 = tpu.assume_multiple %52, 8 : i32
      %c0_42 = arith.constant 0 : index
      %54 = arith.index_cast %53 : i32 to index
      %c0_43 = arith.constant 0 : index
      %55 = vector.load %arg3[%c0_42, %54, %c0_43] : memref<1x16x32xbf16, #tpu.memory_space<vmem>>, vector<1x8x32xbf16>
      %56 = vector.shape_cast %55 : vector<1x8x32xbf16> to vector<8x32xbf16>
      %57 = arith.extf %56 : vector<8x32xbf16> to vector<8x32xf32>
      %58 = vector.shape_cast %57 : vector<8x32xf32> to vector<8x1x32xf32>
      %c0_44 = arith.constant 0 : index
      %59 = arith.index_cast %53 : i32 to index
      %c0_45 = arith.constant 0 : index
      %60 = vector.load %arg4[%c0_44, %59, %c0_45] : memref<1x16x32xbf16, #tpu.memory_space<vmem>>, vector<1x8x32xbf16>
      %61 = vector.shape_cast %60 : vector<1x8x32xbf16> to vector<8x32xbf16>
      %62 = arith.extf %61 : vector<8x32xbf16> to vector<8x32xf32>
      %63 = vector.shape_cast %62 : vector<8x32xf32> to vector<8x1x32xf32>
      %c0_46 = arith.constant 0 : index
      %64 = arith.index_cast %53 : i32 to index
      %c0_47 = arith.constant 0 : index
      %65 = vector.load %arg5[%c0_46, %64, %c0_47] : memref<1x16x32xf32, #tpu.memory_space<vmem>>, vector<1x8x32xf32>
      %66 = vector.shape_cast %65 : vector<1x8x32xf32> to vector<8x32xf32>
      %67 = vector.shape_cast %66 : vector<8x32xf32> to vector<8x32x1xf32>
      %c0_48 = arith.constant 0 : index
      %c0_49 = arith.constant 0 : index
      %c0_50 = arith.constant 0 : index
      %68 = vector.load %arg6[%c0_48, %c0_49, %c0_50] : memref<1x32x32xf32, #tpu.memory_space<vmem>>, vector<1x32x32xf32>
      %69 = vector.shape_cast %68 : vector<1x32x32xf32> to vector<32x32xf32>
      %70 = vector.shape_cast %69 : vector<32x32xf32> to vector<1x32x32xf32>
      %71 = vector.broadcast %58 : vector<8x1x32xf32> to vector<8x32x32xf32>
      %72 = vector.broadcast %8 : vector<1x32x1xf32> to vector<8x32x32xf32>
      %73 = arith.mulf %71, %72 : vector<8x32x32xf32>
      %74 = vector.broadcast %63 : vector<8x1x32xf32> to vector<8x32x32xf32>
      %75 = vector.broadcast %10 : vector<1x32x1xf32> to vector<8x32x32xf32>
      %76 = arith.mulf %74, %75 : vector<8x32x32xf32>
      %77 = arith.addf %73, %76 : vector<8x32x32xf32>
      %78 = vector.broadcast %67 : vector<8x32x1xf32> to vector<8x32x32xf32>
      %79 = arith.addf %77, %78 : vector<8x32x32xf32>
      %80 = vector.broadcast %70 : vector<1x32x32xf32> to vector<8x32x32xf32>
      %81 = arith.addf %79, %80 : vector<8x32x32xf32>
      %cst_51 = arith.constant 0.000000e+00 : f32
      %82 = vector.broadcast %cst_51 : f32 to vector<8x32x32xf32>
      %83 = arith.maximumf %81, %82 : vector<8x32x32xf32>
      %cst_52 = arith.constant dense<0.000000e+00> : vector<8x32xf32>
      %84 = vector.multi_reduction <add>, %83, %cst_52 [2] : vector<8x32x32xf32> to vector<8x32xf32>
      %85 = arith.index_cast %53 : i32 to index
      %c0_53 = arith.constant 0 : index
      %86 = vector.load %arg21[%85, %c0_53] : memref<16x32xf32, #tpu.memory_space<vmem>>, vector<8x32xf32>
      tpu.vector_store %arg21[%85, %c0_53], %84 {strides = array<i32>} : memref<16x32xf32, #tpu.memory_space<vmem>>, vector<8x32xf32>,
    }
    %c2_i32_6 = arith.constant 2 : i32
    %c0_7 = arith.constant 0 : index
    %c0_8 = arith.constant 0 : index
    %12 = vector.load %arg21[%c0_7, %c0_8] : memref<16x32xf32, #tpu.memory_space<vmem>>, vector<16x32xf32>
    %13 = vector.broadcast %6 : f32 to vector<16x32xf32>
    %14 = arith.mulf %12, %13 : vector<16x32xf32>
    %c0_9 = arith.constant 0 : index
    %c0_10 = arith.constant 0 : index
    %15 = vector.load %arg10[%c0_9, %c0_10] : memref<32x32xf32, #tpu.memory_space<vmem>>, vector<32x32xf32>
    %cst_11 = arith.constant dense<0.000000e+00> : vector<16x32xf32>
    %16 = tpu.matmul %14, %15, %cst_11 {dimension_numbers = #tpu.dot_dimension_numbers<[1], [0], [0], [1], [0, 0, 1, 1], [], []>} : vector<16x32xf32>, vector<32x32xf32>, vector<16x32xf32> -> vector<16x32xf32>
    %c0_12 = arith.constant 0 : index
    %c0_13 = arith.constant 0 : index
    %17 = vector.load %arg11[%c0_12, %c0_13] : memref<1x32xf32, #tpu.memory_space<vmem>>, vector<1x32xf32>
    %18 = vector.broadcast %4 : f32 to vector<1x32xf32>
    %19 = arith.mulf %17, %18 : vector<1x32xf32>
    %20 = vector.broadcast %19 : vector<1x32xf32> to vector<16x32xf32>
    %21 = arith.addf %16, %20 : vector<16x32xf32>
    %c0_14 = arith.constant 0 : index
    %c0_15 = arith.constant 0 : index
    %c0_16 = arith.constant 0 : index
    %22 = vector.load %arg7[%c0_14, %c0_15, %c0_16] : memref<1x16x32xf32, #tpu.memory_space<vmem>>, vector<1x16x32xf32>
    %23 = vector.shape_cast %22 : vector<1x16x32xf32> to vector<16x32xf32>
    %c0_17 = arith.constant 0 : index
    %c0_18 = arith.constant 0 : index
    %24 = vector.load %arg12[%c0_17, %c0_18] : memref<32x32xf32, #tpu.memory_space<vmem>>, vector<32x32xf32>
    %cst_19 = arith.constant dense<0.000000e+00> : vector<16x32xf32>
    %25 = tpu.matmul %23, %24, %cst_19 {dimension_numbers = #tpu.dot_dimension_numbers<[1], [0], [0], [1], [0, 0, 1, 1], [], []>} : vector<16x32xf32>, vector<32x32xf32>, vector<16x32xf32> -> vector<16x32xf32>
    %c0_20 = arith.constant 0 : index
    %c0_21 = arith.constant 0 : index
    %26 = vector.load %arg13[%c0_20, %c0_21] : memref<1x32xf32, #tpu.memory_space<vmem>>, vector<1x32xf32>
    %27 = vector.broadcast %26 : vector<1x32xf32> to vector<16x32xf32>
    %28 = arith.addf %25, %27 : vector<16x32xf32>
    %cst_22 = arith.constant 0.000000e+00 : f32
    %29 = vector.broadcast %cst_22 : f32 to vector<16x32xf32>
    %30 = arith.maximumf %28, %29 : vector<16x32xf32>
    %c0_23 = arith.constant 0 : index
    %c0_24 = arith.constant 0 : index
    %31 = vector.load %arg14[%c0_23, %c0_24] : memref<32x32xf32, #tpu.memory_space<vmem>>, vector<32x32xf32>
    %cst_25 = arith.constant dense<0.000000e+00> : vector<16x32xf32>
    %32 = tpu.matmul %30, %31, %cst_25 {dimension_numbers = #tpu.dot_dimension_numbers<[1], [0], [0], [1], [0, 0, 1, 1], [], []>} : vector<16x32xf32>, vector<32x32xf32>, vector<16x32xf32> -> vector<16x32xf32>
    %c0_26 = arith.constant 0 : index
    %c0_27 = arith.constant 0 : index
    %33 = vector.load %arg15[%c0_26, %c0_27] : memref<1x32xf32, #tpu.memory_space<vmem>>, vector<1x32xf32>
    %34 = vector.broadcast %33 : vector<1x32xf32> to vector<16x32xf32>
    %35 = arith.addf %32, %34 : vector<16x32xf32>
    %36 = arith.addf %35, %21 : vector<16x32xf32>
    %c0_28 = arith.constant 0 : index
    %c0_29 = arith.constant 0 : index
    %37 = vector.load %arg16[%c0_28, %c0_29] : memref<32x32xf32, #tpu.memory_space<vmem>>, vector<32x32xf32>
    %cst_30 = arith.constant dense<0.000000e+00> : vector<16x32xf32>
    %38 = tpu.matmul %36, %37, %cst_30 {dimension_numbers = #tpu.dot_dimension_numbers<[1], [0], [0], [1], [0, 0, 1, 1], [], []>} : vector<16x32xf32>, vector<32x32xf32>, vector<16x32xf32> -> vector<16x32xf32>
    %c0_31 = arith.constant 0 : index
    %c0_32 = arith.constant 0 : index
    %39 = vector.load %arg17[%c0_31, %c0_32] : memref<1x32xf32, #tpu.memory_space<vmem>>, vector<1x32xf32>
    %40 = vector.broadcast %39 : vector<1x32xf32> to vector<16x32xf32>
    %41 = arith.addf %38, %40 : vector<16x32xf32>
    %cst_33 = arith.constant 0.000000e+00 : f32
    %42 = vector.broadcast %cst_33 : f32 to vector<16x32xf32>
    %43 = arith.maximumf %41, %42 : vector<16x32xf32>
    %c0_34 = arith.constant 0 : index
    %c0_35 = arith.constant 0 : index
    %44 = vector.load %arg18[%c0_34, %c0_35] : memref<32x1xf32, #tpu.memory_space<vmem>>, vector<32x1xf32>
    %cst_36 = arith.constant dense<0.000000e+00> : vector<16x1xf32>
    %45 = tpu.matmul %43, %44, %cst_36 {dimension_numbers = #tpu.dot_dimension_numbers<[1], [0], [0], [1], [0, 0, 1, 1], [], []>} : vector<16x32xf32>, vector<32x1xf32>, vector<16x1xf32> -> vector<16x1xf32>
    %c0_37 = arith.constant 0 : index
    %c0_38 = arith.constant 0 : index
    %46 = vector.load %arg19[%c0_37, %c0_38] : memref<1x1xf32, #tpu.memory_space<vmem>>, vector<1x1xf32>
    %47 = vector.broadcast %46 : vector<1x1xf32> to vector<16x1xf32>
    %48 = arith.addf %45, %47 : vector<16x1xf32>
    %c0_39 = arith.constant 0 : index
    %c0_40 = arith.constant 0 : index
    %c0_41 = arith.constant 0 : index
    %49 = vector.load %arg20[%c0_39, %c0_40, %c0_41] : memref<1x16x1xf32, #tpu.memory_space<vmem>>, vector<1x16x1xf32>
    %50 = vector.shape_cast %49 : vector<1x16x1xf32> to vector<16x1xf32>
    %51 = vector.shape_cast %48 : vector<16x1xf32> to vector<1x16x1xf32>
    tpu.vector_store %arg20[%c0_39, %c0_40, %c0_41], %51 {strides = array<i32>} : memref<1x16x1xf32, #tpu.memory_space<vmem>>, vector<1x16x1xf32>,
    return
  }
  func.func @transform_0(%arg0: i32, %arg1: i32, %arg2: memref<2xi32, #tpu.memory_space<smem>>) -> (i32, i32, i32) {
    %c0_i32 = arith.constant 0 : i32
    %c0_i32_0 = arith.constant 0 : i32
    return %arg0, %arg1, %c0_i32 : i32, i32, i32
  }
  func.func @transform_1(%arg0: i32, %arg1: i32, %arg2: memref<2xi32, #tpu.memory_space<smem>>) -> (i32, i32, i32) {
    %c0_i32 = arith.constant 0 : i32
    %c0_i32_0 = arith.constant 0 : i32
    return %arg0, %arg1, %c0_i32 : i32, i32, i32
  }
  func.func @transform_2(%arg0: i32, %arg1: i32, %arg2: memref<2xi32, #tpu.memory_space<smem>>) -> (i32, i32, i32) {
    %c0_i32 = arith.constant 0 : i32
    %c0_i32_0 = arith.constant 0 : i32
    return %arg0, %arg1, %c0_i32 : i32, i32, i32
  }
  func.func @transform_3(%arg0: i32, %arg1: i32, %arg2: memref<2xi32, #tpu.memory_space<smem>>) -> (i32, i32, i32) {
    %c0_i32 = arith.constant 0 : i32
    %c0_i32_0 = arith.constant 0 : i32
    %c0_i32_1 = arith.constant 0 : i32
    return %arg0, %c0_i32, %c0_i32_0 : i32, i32, i32
  }
  func.func @transform_4(%arg0: i32, %arg1: i32, %arg2: memref<2xi32, #tpu.memory_space<smem>>) -> (i32, i32, i32) {
    %c0_i32 = arith.constant 0 : i32
    %c0_i32_0 = arith.constant 0 : i32
    return %arg0, %arg1, %c0_i32 : i32, i32, i32
  }
  func.func @transform_5(%arg0: i32, %arg1: i32, %arg2: memref<2xi32, #tpu.memory_space<smem>>) -> (i32, i32) {
    %c0_i32 = arith.constant 0 : i32
    %c0_i32_0 = arith.constant 0 : i32
    %c0_i32_1 = arith.constant 0 : i32
    return %c0_i32, %c0_i32_0 : i32, i32
  }
  func.func @transform_6(%arg0: i32, %arg1: i32, %arg2: memref<2xi32, #tpu.memory_space<smem>>) -> (i32, i32) {
    %c0_i32 = arith.constant 0 : i32
    %c0_i32_0 = arith.constant 0 : i32
    %c0_i32_1 = arith.constant 0 : i32
    return %c0_i32, %c0_i32_0 : i32, i32
  }
  func.func @transform_7(%arg0: i32, %arg1: i32, %arg2: memref<2xi32, #tpu.memory_space<smem>>) -> (i32, i32) {
    %c0_i32 = arith.constant 0 : i32
    %c0_i32_0 = arith.constant 0 : i32
    %c0_i32_1 = arith.constant 0 : i32
    return %c0_i32, %c0_i32_0 : i32, i32
  }
  func.func @transform_8(%arg0: i32, %arg1: i32, %arg2: memref<2xi32, #tpu.memory_space<smem>>) -> (i32, i32) {
    %c0_i32 = arith.constant 0 : i32
    %c0_i32_0 = arith.constant 0 : i32
    %c0_i32_1 = arith.constant 0 : i32
    return %c0_i32, %c0_i32_0 : i32, i32
  }
  func.func @transform_9(%arg0: i32, %arg1: i32, %arg2: memref<2xi32, #tpu.memory_space<smem>>) -> (i32, i32) {
    %c0_i32 = arith.constant 0 : i32
    %c0_i32_0 = arith.constant 0 : i32
    %c0_i32_1 = arith.constant 0 : i32
    return %c0_i32, %c0_i32_0 : i32, i32
  }
  func.func @transform_10(%arg0: i32, %arg1: i32, %arg2: memref<2xi32, #tpu.memory_space<smem>>) -> (i32, i32) {
    %c0_i32 = arith.constant 0 : i32
    %c0_i32_0 = arith.constant 0 : i32
    %c0_i32_1 = arith.constant 0 : i32
    return %c0_i32, %c0_i32_0 : i32, i32
  }
  func.func @transform_11(%arg0: i32, %arg1: i32, %arg2: memref<2xi32, #tpu.memory_space<smem>>) -> (i32, i32) {
    %c0_i32 = arith.constant 0 : i32
    %c0_i32_0 = arith.constant 0 : i32
    %c0_i32_1 = arith.constant 0 : i32
    return %c0_i32, %c0_i32_0 : i32, i32
  }
  func.func @transform_12(%arg0: i32, %arg1: i32, %arg2: memref<2xi32, #tpu.memory_space<smem>>) -> (i32, i32) {
    %c0_i32 = arith.constant 0 : i32
    %c0_i32_0 = arith.constant 0 : i32
    %c0_i32_1 = arith.constant 0 : i32
    return %c0_i32, %c0_i32_0 : i32, i32
  }
  func.func @transform_13(%arg0: i32, %arg1: i32, %arg2: memref<2xi32, #tpu.memory_space<smem>>) -> (i32, i32) {
    %c0_i32 = arith.constant 0 : i32
    %c0_i32_0 = arith.constant 0 : i32
    %c0_i32_1 = arith.constant 0 : i32
    return %c0_i32, %c0_i32_0 : i32, i32
  }
  func.func @transform_14(%arg0: i32, %arg1: i32, %arg2: memref<2xi32, #tpu.memory_space<smem>>) -> (i32, i32) {
    %c0_i32 = arith.constant 0 : i32
    %c0_i32_0 = arith.constant 0 : i32
    %c0_i32_1 = arith.constant 0 : i32
    return %c0_i32, %c0_i32_0 : i32, i32
  }
  func.func @transform_15(%arg0: i32, %arg1: i32, %arg2: memref<2xi32, #tpu.memory_space<smem>>) -> (i32, i32) {
    %c0_i32 = arith.constant 0 : i32
    %c0_i32_0 = arith.constant 0 : i32
    %c0_i32_1 = arith.constant 0 : i32
    return %c0_i32, %c0_i32_0 : i32, i32
  }
  func.func @transform_16(%arg0: i32, %arg1: i32, %arg2: memref<2xi32, #tpu.memory_space<smem>>) -> (i32, i32) {
    %c0_i32 = arith.constant 0 : i32
    %c0_i32_0 = arith.constant 0 : i32
    %c0_i32_1 = arith.constant 0 : i32
    return %c0_i32, %c0_i32_0 : i32, i32
  }
  func.func @transform_17(%arg0: i32, %arg1: i32, %arg2: memref<2xi32, #tpu.memory_space<smem>>) -> (i32, i32, i32) {
    %c0_i32 = arith.constant 0 : i32
    %c0_i32_0 = arith.constant 0 : i32
    return %arg0, %arg1, %c0_i32 : i32, i32, i32
  }
}

</mosaic_0001>

<llo_original>
// kernel: dense_invariant_scale_forward.1
$region0: #{dense_invariant_scale_forward.1}
  #allocation0 [shape = 'u32[]', space=smem, size = 0x4, offset = 0x4, fixed_abs, tag = 'smem constant byte address 0x4 - core index']
  #allocation1 [shape = 'u32[144,128]{1,0:T(1,128)}', space=vmem, size = 0x12000, scoped, tag = 'internal scratch']
  #allocation2 [shape = 'f32[16,32]{1,0:T(8,128)}', space=vmem, size = 0x2000, scoped, tag = 'scratch operand']
  #allocation3 [shape = 's32[1]{0}', space=sflag, size = 0x4, scoped, tag = 'scoped memory for dense_invariant_scale_forward.1']
  #allocation4 [shape = 'u8[512]{0}', space=smem, size = 0x200, scoped, tag = 'prefetched SMEM operand 0']
  #allocation5 [shape = 'f32[1,1]{1,0:T(1,128)S(1)}', space=vmem, size = 0x200, scoped, tag = 'scoped memory for dense_invariant_scale_forward.1']
  %s0 = inlined_call_operand.vmem [shape: s32[2], index: 0, kind: input, shape index: {}]
  %s1 = inlined_call_operand.vmem [shape: bf16[2,32,32], index: 1, kind: input, shape index: {}]
  %s2 = inlined_call_operand.vmem [shape: bf16[2,32,32], index: 2, kind: input, shape index: {}]
  %s3 = inlined_call_operand.vmem [shape: f32[2,32,32], index: 3, kind: input, shape index: {}]
  %s4 = inlined_call_operand.vmem [shape: f32[2,32,32], index: 4, kind: input, shape index: {}]
  %s5 = inlined_call_operand.vmem [shape: f32[2,32,32], index: 5, kind: input, shape index: {}]
  %s6 = inlined_call_operand.vmem [shape: f32[32,1], index: 6, kind: input, shape index: {}]
  %s7 = inlined_call_operand.vmem [shape: f32[32,1], index: 7, kind: input, shape index: {}]
  %s8 = inlined_call_operand.vmem [shape: f32[32,32], index: 8, kind: input, shape index: {}]
  %s9 = inlined_call_operand.vmem [shape: f32[1,32], index: 9, kind: input, shape index: {}]
  %s10 = inlined_call_operand.vmem [shape: f32[32,32], index: 10, kind: input, shape index: {}]
  %s11 = inlined_call_operand.vmem [shape: f32[1,32], index: 11, kind: input, shape index: {}]
  %s12 = inlined_call_operand.vmem [shape: f32[32,32], index: 12, kind: input, shape index: {}]
  %s13 = inlined_call_operand.vmem [shape: f32[1,32], index: 13, kind: input, shape index: {}]
  %s14 = inlined_call_operand.vmem [shape: f32[32,32], index: 14, kind: input, shape index: {}]
  %s15 = inlined_call_operand.vmem [shape: f32[1,32], index: 15, kind: input, shape index: {}]
  %s16 = inlined_call_operand.vmem [shape: f32[32,1], index: 16, kind: input, shape index: {}]
  %s17 = inlined_call_operand.<no memory space> [shape: f32[1,1], index: 17, kind: input, shape index: {}]
  %s18 = inlined_call_operand.vmem [shape: f32[2,32,1], index: 18, kind: output, shape index: {}]
  %s19 = sld [smem:[#allocation0]]
  $region108: #{dense_invariant_scale_forward.1} parent=0
    _
  %s21 = ssub.s32 1, %s19
  %s22 = scalar_select 0, %s21, %s19
  %s23 = sshll.u32 %s0, 4
  %s24 = int_to_ptr.vmem [resolvable:$true] %s23
  %26 = dma.vmem_to_smem %s24, 16, [#allocation4], [#allocation3]
  %v27 = vstv %s17
  %28 = vst [vmem:[#allocation5] sm:$0x1] %v27
  %29 = dma.done [#allocation3], 16
  %30 = sfence
  loop: start=0, step=1, limit=6
  $region2: #{dense_invariant_scale_forward.1} parent=0 // loop_pre_header
    _
  $region3: #{dense_invariant_scale_forward.1} parent=0 // loop_header
    %s32 = sphi 0, %s36
    %p33 = scmp.ge.s32.totalorder %s32, 6
    %s39 = sphi 0, %s51
    %s40 = sphi 0, %s47
    %s41 = sphi 0, %s39
    %s42 = sphi 0, %s40
    %s43 = sphi 0, %s41
    %s44 = sphi 0, %s42
    %s56 = sphi 0, %s58
    %s59 = sphi 0, %s56
    %s60 = sphi 0, %s59
    %s76 = sphi 0, %s60
    %s84 = sphi 0, %s86
    %s87 = sphi 0, %s84
    %s88 = sphi 0, %s87
    %s104 = sphi 0, %s88
    %s112 = sphi 0, %s114
    %s115 = sphi 0, %s112
    %s116 = sphi 0, %s115
    %s132 = sphi 0, %s116
    %s138 = sphi 0, %s140
    %s141 = sphi 0, %s138
    %s142 = sphi 0, %s141
    %s158 = sphi 0, %s142
    %s166 = sphi 0, %s168
    %s169 = sphi 0, %s166
    %s170 = sphi 0, %s169
    %s186 = sphi 0, %s170
    %s190 = sphi 0, %s190
    %s192 = sphi 0, %s190
    %s193 = sphi 0, %s192
    %s207 = sphi 0, %s193
    %s211 = sphi 0, %s211
    %s213 = sphi 0, %s211
    %s214 = sphi 0, %s213
    %s228 = sphi 0, %s214
    %s232 = sphi 0, %s232
    %s234 = sphi 0, %s232
    %s235 = sphi 0, %s234
    %s249 = sphi 0, %s235
    %s253 = sphi 0, %s253
    %s255 = sphi 0, %s253
    %s256 = sphi 0, %s255
    %s270 = sphi 0, %s256
    %s274 = sphi 0, %s274
    %s276 = sphi 0, %s274
    %s277 = sphi 0, %s276
    %s291 = sphi 0, %s277
    %s295 = sphi 0, %s295
    %s297 = sphi 0, %s295
    %s298 = sphi 0, %s297
    %s312 = sphi 0, %s298
    %s316 = sphi 0, %s316
    %s318 = sphi 0, %s316
    %s319 = sphi 0, %s318
    %s333 = sphi 0, %s319
    %s337 = sphi 0, %s337
    %s339 = sphi 0, %s337
    %s340 = sphi 0, %s339
    %s354 = sphi 0, %s340
    %s358 = sphi 0, %s358
    %s360 = sphi 0, %s358
    %s361 = sphi 0, %s360
    %s375 = sphi 0, %s361
    %s379 = sphi 0, %s379
    %s381 = sphi 0, %s379
    %s382 = sphi 0, %s381
    %s396 = sphi 0, %s382
    %s400 = sphi 0, %s400
    %s402 = sphi 0, %s400
    %s403 = sphi 0, %s402
    %s417 = sphi 0, %s403
    %s421 = sphi 0, %s421
    %s423 = sphi 0, %s421
    %s424 = sphi 0, %s423
    %s438 = sphi 0, %s424
    %s446 = sphi 0, %s448
    %s449 = sphi 0, %s446
    %s450 = sphi 0, %s449
    %s466 = sphi 0, %s450
  $region4: #{dense_invariant_scale_forward.1} parent=0 // loop_header_branch
    %35 = sbr.rel (%p33) target = $region8
  $region5: #{dense_invariant_scale_forward.1} parent=0 // loop_body
    %s37 = ssub.s32 %s32, 1
    %s38 = ssub.s32 %s32, 2
    %s45 = sadd.s32 1, %s40
    %p46 = scmp.ge.s32.totalorder %s45, 2
    %s47 = scalar_select %p46, 0, %s45
    %s48 = sadd.s32 1, %s39
    %s49 = scalar_select %p46, %s48, %s39
    %p50 = scmp.ge.s32.totalorder %s49, 2
    %s51 = scalar_select %p50, 0, %s49
    %s52 = ssub.s32 %s39, %s51
    %s53 = ssub.s32 %s40, %s47
    %s54 = sor.u32 %s52, %s53
    %p55 = scmp.eq.s32.totalorder %s54, 0
    %s57 = sadd.s32 %s56, 1
    %s58 = scalar_select %p55, %s56, %s57
    %p61 = pneg %p55
    %p62 = scmp.eq.s32.totalorder %s32, 3
    %p63 = por %p61, %p62
    %p64 = scmp.ne.s32.totalorder %s56, %s59
    %p65 = scmp.eq.s32.totalorder %s32, 0
    %p66 = por %p64, %p65
    %p67 = scmp.ne.s32.totalorder %s56, %s59
    %p68 = scmp.eq.s32.totalorder %s37, 3
    %p69 = por %p67, %p68
    %p70 = scmp.ne.s32.totalorder %s59, %s60
    %p71 = scmp.eq.s32.totalorder %s37, 0
    %p72 = por %p70, %p71
    %p73 = scmp.ne.s32.totalorder %s59, %s60
    %p74 = scmp.eq.s32.totalorder %s38, 3
    %p75 = por %p73, %p74
    %p77 = scmp.ne.s32.totalorder %s60, %s76
    %p78 = scmp.eq.s32.totalorder %s38, 0
    %p79 = por %p77, %p78
    %s80 = ssub.s32 %s39, %s51
    %s81 = ssub.s32 %s40, %s47
    %s82 = sor.u32 %s80, %s81
    %p83 = scmp.eq.s32.totalorder %s82, 0
    %s85 = sadd.s32 %s84, 1
    %s86 = scalar_select %p83, %s84, %s85
    %p89 = pneg %p83
    %p90 = scmp.eq.s32.totalorder %s32, 3
    %p91 = por %p89, %p90
    %p92 = scmp.ne.s32.totalorder %s84, %s87
    %p93 = scmp.eq.s32.totalorder %s32, 0
    %p94 = por %p92, %p93
    %p95 = scmp.ne.s32.totalorder %s84, %s87
    %p96 = scmp.eq.s32.totalorder %s37, 3
    %p97 = por %p95, %p96
    %p98 = scmp.ne.s32.totalorder %s87, %s88
    %p99 = scmp.eq.s32.totalorder %s37, 0
    %p100 = por %p98, %p99
    %p101 = scmp.ne.s32.totalorder %s87, %s88
    %p102 = scmp.eq.s32.totalorder %s38, 3
    %p103 = por %p101, %p102
    %p105 = scmp.ne.s32.totalorder %s88, %s104
    %p106 = scmp.eq.s32.totalorder %s38, 0
    %p107 = por %p105, %p106
    %s108 = ssub.s32 %s39, %s51
    %s109 = ssub.s32 %s40, %s47
    %s110 = sor.u32 %s108, %s109
    %p111 = scmp.eq.s32.totalorder %s110, 0
    %s113 = sadd.s32 %s112, 1
    %s114 = scalar_select %p111, %s112, %s113
    %p117 = pneg %p111
    %p118 = scmp.eq.s32.totalorder %s32, 3
    %p119 = por %p117, %p118
    %p120 = scmp.ne.s32.totalorder %s112, %s115
    %p121 = scmp.eq.s32.totalorder %s32, 0
    %p122 = por %p120, %p121
    %p123 = scmp.ne.s32.totalorder %s112, %s115
    %p124 = scmp.eq.s32.totalorder %s37, 3
    %p125 = por %p123, %p124
    %p126 = scmp.ne.s32.totalorder %s115, %s116
    %p127 = scmp.eq.s32.totalorder %s37, 0
    %p128 = por %p126, %p127
    %p129 = scmp.ne.s32.totalorder %s115, %s116
    %p130 = scmp.eq.s32.totalorder %s38, 3
    %p131 = por %p129, %p130
    %p133 = scmp.ne.s32.totalorder %s116, %s132
    %p134 = scmp.eq.s32.totalorder %s38, 0
    %p135 = por %p133, %p134
    %s136 = ssub.s32 %s39, %s51
    %p137 = scmp.eq.s32.totalorder %s136, 0
    %s139 = sadd.s32 %s138, 1
    %s140 = scalar_select %p137, %s138, %s139
    %p143 = pneg %p137
    %p144 = scmp.eq.s32.totalorder %s32, 3
    %p145 = por %p143, %p144
    %p146 = scmp.ne.s32.totalorder %s138, %s141
    %p147 = scmp.eq.s32.totalorder %s32, 0
    %p148 = por %p146, %p147
    %p149 = scmp.ne.s32.totalorder %s138, %s141
    %p150 = scmp.eq.s32.totalorder %s37, 3
    %p151 = por %p149, %p150
    %p152 = scmp.ne.s32.totalorder %s141, %s142
    %p153 = scmp.eq.s32.totalorder %s37, 0
    %p154 = por %p152, %p153
    %p155 = scmp.ne.s32.totalorder %s141, %s142
    %p156 = scmp.eq.s32.totalorder %s38, 3
    %p157 = por %p155, %p156
    %p159 = scmp.ne.s32.totalorder %s142, %s158
    %p160 = scmp.eq.s32.totalorder %s38, 0
    %p161 = por %p159, %p160
    %s162 = ssub.s32 %s39, %s51
    %s163 = ssub.s32 %s40, %s47
    %s164 = sor.u32 %s162, %s163
    %p165 = scmp.eq.s32.totalorder %s164, 0
    %s167 = sadd.s32 %s166, 1
    %s168 = scalar_select %p165, %s166, %s167
    %p171 = pneg %p165
    %p172 = scmp.eq.s32.totalorder %s32, 3
    %p173 = por %p171, %p172
    %p174 = scmp.ne.s32.totalorder %s166, %s169
    %p175 = scmp.eq.s32.totalorder %s32, 0
    %p176 = por %p174, %p175
    %p177 = scmp.ne.s32.totalorder %s166, %s169
    %p178 = scmp.eq.s32.totalorder %s37, 3
    %p179 = por %p177, %p178
    %p180 = scmp.ne.s32.totalorder %s169, %s170
    %p181 = scmp.eq.s32.totalorder %s37, 0
    %p182 = por %p180, %p181
    %p183 = scmp.ne.s32.totalorder %s169, %s170
    %p184 = scmp.eq.s32.totalorder %s38, 3
    %p185 = por %p183, %p184
    %p187 = scmp.ne.s32.totalorder %s170, %s186
    %p188 = scmp.eq.s32.totalorder %s38, 0
    %p189 = por %p187, %p188
    %s191 = sadd.s32 %s190, 1
    %p194 = scmp.eq.s32.totalorder %s32, 3
    %p195 = scmp.ne.s32.totalorder %s190, %s192
    %p196 = scmp.eq.s32.totalorder %s32, 0
    %p197 = por %p195, %p196
    %p198 = scmp.ne.s32.totalorder %s190, %s192
    %p199 = scmp.eq.s32.totalorder %s37, 3
    %p200 = por %p198, %p199
    %p201 = scmp.ne.s32.totalorder %s192, %s193
    %p202 = scmp.eq.s32.totalorder %s37, 0
    %p203 = por %p201, %p202
    %p204 = scmp.ne.s32.totalorder %s192, %s193
    %p205 = scmp.eq.s32.totalorder %s38, 3
    %p206 = por %p204, %p205
    %p208 = scmp.ne.s32.totalorder %s193, %s207
    %p209 = scmp.eq.s32.totalorder %s38, 0
    %p210 = por %p208, %p209
    %s212 = sadd.s32 %s211, 1
    %p215 = scmp.eq.s32.totalorder %s32, 3
    %p216 = scmp.ne.s32.totalorder %s211, %s213
    %p217 = scmp.eq.s32.totalorder %s32, 0
    %p218 = por %p216, %p217
    %p219 = scmp.ne.s32.totalorder %s211, %s213
    %p220 = scmp.eq.s32.totalorder %s37, 3
    %p221 = por %p219, %p220
    %p222 = scmp.ne.s32.totalorder %s213, %s214
    %p223 = scmp.eq.s32.totalorder %s37, 0
    %p224 = por %p222, %p223
    %p225 = scmp.ne.s32.totalorder %s213, %s214
    %p226 = scmp.eq.s32.totalorder %s38, 3
    %p227 = por %p225, %p226
    %p229 = scmp.ne.s32.totalorder %s214, %s228
    %p230 = scmp.eq.s32.totalorder %s38, 0
    %p231 = por %p229, %p230
    %s233 = sadd.s32 %s232, 1
    %p236 = scmp.eq.s32.totalorder %s32, 3
    %p237 = scmp.ne.s32.totalorder %s232, %s234
    %p238 = scmp.eq.s32.totalorder %s32, 0
    %p239 = por %p237, %p238
    %p240 = scmp.ne.s32.totalorder %s232, %s234
    %p241 = scmp.eq.s32.totalorder %s37, 3
    %p242 = por %p240, %p241
    %p243 = scmp.ne.s32.totalorder %s234, %s235
    %p244 = scmp.eq.s32.totalorder %s37, 0
    %p245 = por %p243, %p244
    %p246 = scmp.ne.s32.totalorder %s234, %s235
    %p247 = scmp.eq.s32.totalorder %s38, 3
    %p248 = por %p246, %p247
    %p250 = scmp.ne.s32.totalorder %s235, %s249
    %p251 = scmp.eq.s32.totalorder %s38, 0
    %p252 = por %p250, %p251
    %s254 = sadd.s32 %s253, 1
    %p257 = scmp.eq.s32.totalorder %s32, 3
    %p258 = scmp.ne.s32.totalorder %s253, %s255
    %p259 = scmp.eq.s32.totalorder %s32, 0
    %p260 = por %p258, %p259
    %p261 = scmp.ne.s32.totalorder %s253, %s255
    %p262 = scmp.eq.s32.totalorder %s37, 3
    %p263 = por %p261, %p262
    %p264 = scmp.ne.s32.totalorder %s255, %s256
    %p265 = scmp.eq.s32.totalorder %s37, 0
    %p266 = por %p264, %p265
    %p267 = scmp.ne.s32.totalorder %s255, %s256
    %p268 = scmp.eq.s32.totalorder %s38, 3
    %p269 = por %p267, %p268
    %p271 = scmp.ne.s32.totalorder %s256, %s270
    %p272 = scmp.eq.s32.totalorder %s38, 0
    %p273 = por %p271, %p272
    %s275 = sadd.s32 %s274, 1
    %p278 = scmp.eq.s32.totalorder %s32, 3
    %p279 = scmp.ne.s32.totalorder %s274, %s276
    %p280 = scmp.eq.s32.totalorder %s32, 0
    %p281 = por %p279, %p280
    %p282 = scmp.ne.s32.totalorder %s274, %s276
    %p283 = scmp.eq.s32.totalorder %s37, 3
    %p284 = por %p282, %p283
    %p285 = scmp.ne.s32.totalorder %s276, %s277
    %p286 = scmp.eq.s32.totalorder %s37, 0
    %p287 = por %p285, %p286
    %p288 = scmp.ne.s32.totalorder %s276, %s277
    %p289 = scmp.eq.s32.totalorder %s38, 3
    %p290 = por %p288, %p289
    %p292 = scmp.ne.s32.totalorder %s277, %s291
    %p293 = scmp.eq.s32.totalorder %s38, 0
    %p294 = por %p292, %p293
    %s296 = sadd.s32 %s295, 1
    %p299 = scmp.eq.s32.totalorder %s32, 3
    %p300 = scmp.ne.s32.totalorder %s295, %s297
    %p301 = scmp.eq.s32.totalorder %s32, 0
    %p302 = por %p300, %p301
    %p303 = scmp.ne.s32.totalorder %s295, %s297
    %p304 = scmp.eq.s32.totalorder %s37, 3
    %p305 = por %p303, %p304
    %p306 = scmp.ne.s32.totalorder %s297, %s298
    %p307 = scmp.eq.s32.totalorder %s37, 0
    %p308 = por %p306, %p307
    %p309 = scmp.ne.s32.totalorder %s297, %s298
    %p310 = scmp.eq.s32.totalorder %s38, 3
    %p311 = por %p309, %p310
    %p313 = scmp.ne.s32.totalorder %s298, %s312
    %p314 = scmp.eq.s32.totalorder %s38, 0
    %p315 = por %p313, %p314
    %s317 = sadd.s32 %s316, 1
    %p320 = scmp.eq.s32.totalorder %s32, 3
    %p321 = scmp.ne.s32.totalorder %s316, %s318
    %p322 = scmp.eq.s32.totalorder %s32, 0
    %p323 = por %p321, %p322
    %p324 = scmp.ne.s32.totalorder %s316, %s318
    %p325 = scmp.eq.s32.totalorder %s37, 3
    %p326 = por %p324, %p325
    %p327 = scmp.ne.s32.totalorder %s318, %s319
    %p328 = scmp.eq.s32.totalorder %s37, 0
    %p329 = por %p327, %p328
    %p330 = scmp.ne.s32.totalorder %s318, %s319
    %p331 = scmp.eq.s32.totalorder %s38, 3
    %p332 = por %p330, %p331
    %p334 = scmp.ne.s32.totalorder %s319, %s333
    %p335 = scmp.eq.s32.totalorder %s38, 0
    %p336 = por %p334, %p335
    %s338 = sadd.s32 %s337, 1
    %p341 = scmp.eq.s32.totalorder %s32, 3
    %p342 = scmp.ne.s32.totalorder %s337, %s339
    %p343 = scmp.eq.s32.totalorder %s32, 0
    %p344 = por %p342, %p343
    %p345 = scmp.ne.s32.totalorder %s337, %s339
    %p346 = scmp.eq.s32.totalorder %s37, 3
    %p347 = por %p345, %p346
    %p348 = scmp.ne.s32.totalorder %s339, %s340
    %p349 = scmp.eq.s32.totalorder %s37, 0
    %p350 = por %p348, %p349
    %p351 = scmp.ne.s32.totalorder %s339, %s340
    %p352 = scmp.eq.s32.totalorder %s38, 3
    %p353 = por %p351, %p352
    %p355 = scmp.ne.s32.totalorder %s340, %s354
    %p356 = scmp.eq.s32.totalorder %s38, 0
    %p357 = por %p355, %p356
    %s359 = sadd.s32 %s358, 1
    %p362 = scmp.eq.s32.totalorder %s32, 3
    %p363 = scmp.ne.s32.totalorder %s358, %s360
    %p364 = scmp.eq.s32.totalorder %s32, 0
    %p365 = por %p363, %p364
    %p366 = scmp.ne.s32.totalorder %s358, %s360
    %p367 = scmp.eq.s32.totalorder %s37, 3
    %p368 = por %p366, %p367
    %p369 = scmp.ne.s32.totalorder %s360, %s361
    %p370 = scmp.eq.s32.totalorder %s37, 0
    %p371 = por %p369, %p370
    %p372 = scmp.ne.s32.totalorder %s360, %s361
    %p373 = scmp.eq.s32.totalorder %s38, 3
    %p374 = por %p372, %p373
    %p376 = scmp.ne.s32.totalorder %s361, %s375
    %p377 = scmp.eq.s32.totalorder %s38, 0
    %p378 = por %p376, %p377
    %s380 = sadd.s32 %s379, 1
    %p383 = scmp.eq.s32.totalorder %s32, 3
    %p384 = scmp.ne.s32.totalorder %s379, %s381
    %p385 = scmp.eq.s32.totalorder %s32, 0
    %p386 = por %p384, %p385
    %p387 = scmp.ne.s32.totalorder %s379, %s381
    %p388 = scmp.eq.s32.totalorder %s37, 3
    %p389 = por %p387, %p388
    %p390 = scmp.ne.s32.totalorder %s381, %s382
    %p391 = scmp.eq.s32.totalorder %s37, 0
    %p392 = por %p390, %p391
    %p393 = scmp.ne.s32.totalorder %s381, %s382
    %p394 = scmp.eq.s32.totalorder %s38, 3
    %p395 = por %p393, %p394
    %p397 = scmp.ne.s32.totalorder %s382, %s396
    %p398 = scmp.eq.s32.totalorder %s38, 0
    %p399 = por %p397, %p398
    %s401 = sadd.s32 %s400, 1
    %p404 = scmp.eq.s32.totalorder %s32, 3
    %p405 = scmp.ne.s32.totalorder %s400, %s402
    %p406 = scmp.eq.s32.totalorder %s32, 0
    %p407 = por %p405, %p406
    %p408 = scmp.ne.s32.totalorder %s400, %s402
    %p409 = scmp.eq.s32.totalorder %s37, 3
    %p410 = por %p408, %p409
    %p411 = scmp.ne.s32.totalorder %s402, %s403
    %p412 = scmp.eq.s32.totalorder %s37, 0
    %p413 = por %p411, %p412
    %p414 = scmp.ne.s32.totalorder %s402, %s403
    %p415 = scmp.eq.s32.totalorder %s38, 3
    %p416 = por %p414, %p415
    %p418 = scmp.ne.s32.totalorder %s403, %s417
    %p419 = scmp.eq.s32.totalorder %s38, 0
    %p420 = por %p418, %p419
    %s422 = sadd.s32 %s421, 1
    %p425 = scmp.eq.s32.totalorder %s32, 3
    %p426 = scmp.ne.s32.totalorder %s421, %s423
    %p427 = scmp.eq.s32.totalorder %s32, 0
    %p428 = por %p426, %p427
    %p429 = scmp.ne.s32.totalorder %s421, %s423
    %p430 = scmp.eq.s32.totalorder %s37, 3
    %p431 = por %p429, %p430
    %p432 = scmp.ne.s32.totalorder %s423, %s424
    %p433 = scmp.eq.s32.totalorder %s37, 0
    %p434 = por %p432, %p433
    %p435 = scmp.ne.s32.totalorder %s423, %s424
    %p436 = scmp.eq.s32.totalorder %s38, 3
    %p437 = por %p435, %p436
    %p439 = scmp.ne.s32.totalorder %s424, %s438
    %p440 = scmp.eq.s32.totalorder %s38, 0
    %p441 = por %p439, %p440
    %s442 = ssub.s32 %s39, %s51
    %s443 = ssub.s32 %s40, %s47
    %s444 = sor.u32 %s442, %s443
    %p445 = scmp.eq.s32.totalorder %s444, 0
    %s447 = sadd.s32 %s446, 1
    %s448 = scalar_select %p445, %s446, %s447
    %p451 = pneg %p445
    %p452 = scmp.eq.s32.totalorder %s32, 3
    %p453 = por %p451, %p452
    %p454 = scmp.ne.s32.totalorder %s446, %s449
    %p455 = scmp.eq.s32.totalorder %s32, 0
    %p456 = por %p454, %p455
    %p457 = scmp.ne.s32.totalorder %s446, %s449
    %p458 = scmp.eq.s32.totalorder %s37, 3
    %p459 = por %p457, %p458
    %p460 = scmp.ne.s32.totalorder %s449, %s450
    %p461 = scmp.eq.s32.totalorder %s37, 0
    %p462 = por %p460, %p461
    %p463 = scmp.ne.s32.totalorder %s449, %s450
    %p464 = scmp.eq.s32.totalorder %s38, 3
    %p465 = por %p463, %p464
    %p467 = scmp.ne.s32.totalorder %s450, %s466
    %p468 = scmp.eq.s32.totalorder %s38, 0
    %p469 = por %p467, %p468
    %p470 = scmp.le.s32.totalorder 1, %s32
    %p471 = scmp.lt.s32.totalorder %s32, 5
    %p472 = pnand %p470, %p471
    %p473 = pneg %p472
    // Predicated region
    $region9: #{dense_invariant_scale_forward.1} parent=5 // pred_check
      _
    $region10: #{dense_invariant_scale_forward.1} parent=5 // pred_check_branch
      %475 = sbr.rel (%p472) target = $region12
    $region11: #{dense_invariant_scale_forward.1} parent=5 // pred_region
      %s476 = ssub.s32 %s32, 1
      // Predicated region
      $region13: #{dense_invariant_scale_forward.1} parent=11 // pred_check
        %p477 = pneg %p203
      $region14: #{dense_invariant_scale_forward.1} parent=11 // pred_check_branch
        %479 = sbr.rel (%p477) target = $region16
      $region15: #{dense_invariant_scale_forward.1} parent=11 // pred_region
        _
      $region16: #{dense_invariant_scale_forward.1} parent=11 // pred_fallthru
        _
      // Predicated region
      $region17: #{dense_invariant_scale_forward.1} parent=11 // pred_check
        %p480 = pneg %p224
      $region18: #{dense_invariant_scale_forward.1} parent=11 // pred_check_branch
        %482 = sbr.rel (%p480) target = $region20
      $region19: #{dense_invariant_scale_forward.1} parent=11 // pred_region
        _
      $region20: #{dense_invariant_scale_forward.1} parent=11 // pred_fallthru
        _
      // Predicated region
      $region21: #{dense_invariant_scale_forward.1} parent=11 // pred_check
        %p483 = pneg %p245
      $region22: #{dense_invariant_scale_forward.1} parent=11 // pred_check_branch
        %485 = sbr.rel (%p483) target = $region24
      $region23: #{dense_invariant_scale_forward.1} parent=11 // pred_region
        _
      $region24: #{dense_invariant_scale_forward.1} parent=11 // pred_fallthru
        _
      // Predicated region
      $region25: #{dense_invariant_scale_forward.1} parent=11 // pred_check
        %p486 = pneg %p266
      $region26: #{dense_invariant_scale_forward.1} parent=11 // pred_check_branch
        %488 = sbr.rel (%p486) target = $region28
      $region27: #{dense_invariant_scale_forward.1} parent=11 // pred_region
        _
      $region28: #{dense_invariant_scale_forward.1} parent=11 // pred_fallthru
        _
      // Predicated region
      $region29: #{dense_invariant_scale_forward.1} parent=11 // pred_check
        %p489 = pneg %p287
      $region30: #{dense_invariant_scale_forward.1} parent=11 // pred_check_branch
        %491 = sbr.rel (%p489) target = $region32
      $region31: #{dense_invariant_scale_forward.1} parent=11 // pred_region
        _
      $region32: #{dense_invariant_scale_forward.1} parent=11 // pred_fallthru
        _
      // Predicated region
      $region33: #{dense_invariant_scale_forward.1} parent=11 // pred_check
        %p492 = pneg %p308
      $region34: #{dense_invariant_scale_forward.1} parent=11 // pred_check_branch
        %494 = sbr.rel (%p492) target = $region36
      $region35: #{dense_invariant_scale_forward.1} parent=11 // pred_region
        _
      $region36: #{dense_invariant_scale_forward.1} parent=11 // pred_fallthru
        _
      // Predicated region
      $region37: #{dense_invariant_scale_forward.1} parent=11 // pred_check
        %p495 = pneg %p329
      $region38: #{dense_invariant_scale_forward.1} parent=11 // pred_check_branch
        %497 = sbr.rel (%p495) target = $region40
      $region39: #{dense_invariant_scale_forward.1} parent=11 // pred_region
        _
      $region40: #{dense_invariant_scale_forward.1} parent=11 // pred_fallthru
        _
      // Predicated region
      $region41: #{dense_invariant_scale_forward.1} parent=11 // pred_check
        %p498 = pneg %p350
      $region42: #{dense_invariant_scale_forward.1} parent=11 // pred_check_branch
        %500 = sbr.rel (%p498) target = $region44
      $region43: #{dense_invariant_scale_forward.1} parent=11 // pred_region
        _
      $region44: #{dense_invariant_scale_forward.1} parent=11 // pred_fallthru
        _
      // Predicated region
      $region45: #{dense_invariant_scale_forward.1} parent=11 // pred_check
        %p501 = pneg %p371
      $region46: #{dense_invariant_scale_forward.1} parent=11 // pred_check_branch
        %503 = sbr.rel (%p501) target = $region48
      $region47: #{dense_invariant_scale_forward.1} parent=11 // pred_region
        _
      $region48: #{dense_invariant_scale_forward.1} parent=11 // pred_fallthru
        _
      // Predicated region
      $region49: #{dense_invariant_scale_forward.1} parent=11 // pred_check
        %p504 = pneg %p392
      $region50: #{dense_invariant_scale_forward.1} parent=11 // pred_check_branch
        %506 = sbr.rel (%p504) target = $region52
      $region51: #{dense_invariant_scale_forward.1} parent=11 // pred_region
        _
      $region52: #{dense_invariant_scale_forward.1} parent=11 // pred_fallthru
        _
      // Predicated region
      $region53: #{dense_invariant_scale_forward.1} parent=11 // pred_check
        %p507 = pneg %p413
      $region54: #{dense_invariant_scale_forward.1} parent=11 // pred_check_branch
        %509 = sbr.rel (%p507) target = $region56
      $region55: #{dense_invariant_scale_forward.1} parent=11 // pred_region
        _
      $region56: #{dense_invariant_scale_forward.1} parent=11 // pred_fallthru
        _
      // Predicated region
      $region57: #{dense_invariant_scale_forward.1} parent=11 // pred_check
        %p510 = pneg %p434
      $region58: #{dense_invariant_scale_forward.1} parent=11 // pred_check_branch
        %512 = sbr.rel (%p510) target = $region60
      $region59: #{dense_invariant_scale_forward.1} parent=11 // pred_region
        _
      $region60: #{dense_invariant_scale_forward.1} parent=11 // pred_fallthru
        _
    $region12: #{dense_invariant_scale_forward.1} parent=5 // pred_fallthru
      _
    %p513 = scmp.lt.s32.totalorder %s32, 4
    // Predicated region
    $region61: #{dense_invariant_scale_forward.1} parent=5 // pred_check
      %p514 = pneg %p513
    $region62: #{dense_invariant_scale_forward.1} parent=5 // pred_check_branch
      %516 = sbr.rel (%p514) target = $region64
    $region63: #{dense_invariant_scale_forward.1} parent=5 // pred_region
      // Predicated region
      $region65: #{dense_invariant_scale_forward.1} parent=63 // pred_check
        %p517 = pneg %p66
      $region66: #{dense_invariant_scale_forward.1} parent=63 // pred_check_branch
        %519 = sbr.rel (%p517) target = $region68
      $region67: #{dense_invariant_scale_forward.1} parent=63 // pred_region
        %s520 = smul.u32 2, %s40
        %p521 = scmp.lt.s32.totalorder %s39, 1
        %s522 = scalar_select %p521, %s39, 1
        %p523 = scmp.lt.s32.totalorder %s520, 3
        %s524 = scalar_select %p523, %s520, 3
        %s525 = smul.addr %s522, 4
        %s526 = sadd.s32 %s524, %s525
        %s527 = smul.addr %s526, 4
        %s528 = scalar_lea.vmem %s1, %s527
        %s529 = smul.u32 2, %s40
      $region68: #{dense_invariant_scale_forward.1} parent=63 // pred_fallthru
        _
      // Predicated region
      $region69: #{dense_invariant_scale_forward.1} parent=63 // pred_check
        %p530 = pneg %p94
      $region70: #{dense_invariant_scale_forward.1} parent=63 // pred_check_branch
        %532 = sbr.rel (%p530) target = $region72
      $region71: #{dense_invariant_scale_forward.1} parent=63 // pred_region
        %s533 = smul.u32 2, %s40
        %p534 = scmp.lt.s32.totalorder %s39, 1
        %s535 = scalar_select %p534, %s39, 1
        %p536 = scmp.lt.s32.totalorder %s533, 3
        %s537 = scalar_select %p536, %s533, 3
        %s538 = smul.addr %s535, 4
        %s539 = sadd.s32 %s537, %s538
        %s540 = smul.addr %s539, 4
        %s541 = scalar_lea.vmem %s2, %s540
        %s542 = smul.u32 2, %s40
      $region72: #{dense_invariant_scale_forward.1} parent=63 // pred_fallthru
        _
      // Predicated region
      $region73: #{dense_invariant_scale_forward.1} parent=63 // pred_check
        %p543 = pneg %p122
      $region74: #{dense_invariant_scale_forward.1} parent=63 // pred_check_branch
        %545 = sbr.rel (%p543) target = $region76
      $region75: #{dense_invariant_scale_forward.1} parent=63 // pred_region
        %s546 = smul.u32 2, %s40
        %p547 = scmp.lt.s32.totalorder %s39, 1
        %s548 = scalar_select %p547, %s39, 1
        %p549 = scmp.lt.s32.totalorder %s546, 3
        %s550 = scalar_select %p549, %s546, 3
        %s551 = smul.addr %s548, 4
        %s552 = sadd.s32 %s550, %s551
        %s553 = smul.addr %s552, 8
        %s554 = scalar_lea.vmem %s3, %s553
        %s555 = smul.u32 2, %s40
      $region76: #{dense_invariant_scale_forward.1} parent=63 // pred_fallthru
        _
      // Predicated region
      $region77: #{dense_invariant_scale_forward.1} parent=63 // pred_check
        %p556 = pneg %p148
      $region78: #{dense_invariant_scale_forward.1} parent=63 // pred_check_branch
        %558 = sbr.rel (%p556) target = $region80
      $region79: #{dense_invariant_scale_forward.1} parent=63 // pred_region
        %p559 = scmp.lt.s32.totalorder %s39, 1
        %s560 = scalar_select %p559, %s39, 1
        %s561 = smul.addr %s560, 4
        %s562 = smul.addr %s561, 8
        %s563 = scalar_lea.vmem %s4, %s562
      $region80: #{dense_invariant_scale_forward.1} parent=63 // pred_fallthru
        _
      // Predicated region
      $region81: #{dense_invariant_scale_forward.1} parent=63 // pred_check
        %p564 = pneg %p176
      $region82: #{dense_invariant_scale_forward.1} parent=63 // pred_check_branch
        %566 = sbr.rel (%p564) target = $region84
      $region83: #{dense_invariant_scale_forward.1} parent=63 // pred_region
        %s567 = smul.u32 2, %s40
        %p568 = scmp.lt.s32.totalorder %s39, 1
        %s569 = scalar_select %p568, %s39, 1
        %p570 = scmp.lt.s32.totalorder %s567, 3
        %s571 = scalar_select %p570, %s567, 3
        %s572 = smul.addr %s569, 4
        %s573 = sadd.s32 %s571, %s572
        %s574 = smul.addr %s573, 8
        %s575 = scalar_lea.vmem %s5, %s574
        %s576 = smul.u32 2, %s40
      $region84: #{dense_invariant_scale_forward.1} parent=63 // pred_fallthru
        _
    $region64: #{dense_invariant_scale_forward.1} parent=5 // pred_fallthru
      _
    %p577 = scmp.le.s32.totalorder 1, %s32
    %p578 = scmp.lt.s32.totalorder %s32, 5
    %p579 = pnand %p577, %p578
    %p580 = pneg %p579
    // Predicated region
    $region85: #{dense_invariant_scale_forward.1} parent=5 // pred_check
      _
    $region86: #{dense_invariant_scale_forward.1} parent=5 // pred_check_branch
      %582 = sbr.rel (%p579) target = $region88
    $region87: #{dense_invariant_scale_forward.1} parent=5 // pred_region
      %s583 = ssub.s32 %s32, 1
      %s584 = smul.u32 2, %s42
      %p585 = scmp.lt.s32.totalorder %s41, 1
      %s586 = scalar_select %p585, %s41, 1
      %p587 = scmp.lt.s32.totalorder %s584, 3
      %s588 = scalar_select %p587, %s584, 3
      %s589 = smul.addr %s586, 4
      %s590 = sadd.s32 %s588, %s589
      %s591 = smul.addr %s590, 4
      %s592 = scalar_lea.vmem %s1, %s591
      %p593 = pneg %p72
      %p594 = pneg %p69
      %s595 = smul.u32 2, %s42
      %p596 = scmp.lt.s32.totalorder %s41, 1
      %s597 = scalar_select %p596, %s41, 1
      %p598 = scmp.lt.s32.totalorder %s595, 3
      %s599 = scalar_select %p598, %s595, 3
      %s600 = smul.addr %s597, 4
      %s601 = sadd.s32 %s599, %s600
      %s602 = smul.addr %s601, 4
      %s603 = scalar_lea.vmem %s2, %s602
      %p604 = pneg %p100
      %p605 = pneg %p97
      %s606 = smul.u32 2, %s42
      %p607 = scmp.lt.s32.totalorder %s41, 1
      %s608 = scalar_select %p607, %s41, 1
      %p609 = scmp.lt.s32.totalorder %s606, 3
      %s610 = scalar_select %p609, %s606, 3
      %s611 = smul.addr %s608, 4
      %s612 = sadd.s32 %s610, %s611
      %s613 = smul.addr %s612, 8
      %s614 = scalar_lea.vmem %s3, %s613
      %p615 = pneg %p128
      %p616 = pneg %p125
      %p617 = scmp.lt.s32.totalorder %s41, 1
      %s618 = scalar_select %p617, %s41, 1
      %s619 = smul.addr %s618, 4
      %s620 = smul.addr %s619, 8
      %s621 = scalar_lea.vmem %s4, %s620
      %p622 = pneg %p154
      %p623 = pneg %p151
      %s624 = smul.u32 2, %s42
      %p625 = scmp.lt.s32.totalorder %s41, 1
      %s626 = scalar_select %p625, %s41, 1
      %p627 = scmp.lt.s32.totalorder %s624, 3
      %s628 = scalar_select %p627, %s624, 3
      %s629 = smul.addr %s626, 4
      %s630 = sadd.s32 %s628, %s629
      %s631 = smul.addr %s630, 8
      %s632 = scalar_lea.vmem %s5, %s631
      %p633 = pneg %p182
      %p634 = pneg %p179
      %p635 = pneg %p203
      %p636 = pneg %p200
      %p637 = pneg %p224
      %p638 = pneg %p221
      %p639 = pneg %p245
      %p640 = pneg %p242
      %p641 = pneg %p266
      %p642 = pneg %p263
      %p643 = pneg %p287
      %p644 = pneg %p284
      %p645 = pneg %p308
      %p646 = pneg %p305
      %p647 = pneg %p329
      %p648 = pneg %p326
      %p649 = pneg %p350
      %p650 = pneg %p347
      %p651 = pneg %p371
      %p652 = pneg %p368
      %p653 = pneg %p392
      %p654 = pneg %p389
      %p655 = pneg %p413
      %p656 = pneg %p410
      %p657 = pneg %p434
      %p658 = pneg %p431
      %p659 = pneg %p462
      %p660 = pneg %p459
      %s661 = smul.u32 2, %s42
      %p662 = scmp.lt.s32.totalorder %s41, 1
      %s663 = scalar_select %p662, %s41, 1
      %p664 = scmp.lt.s32.totalorder %s661, 3
      %s665 = scalar_select %p664, %s661, 3
      %s666 = smul.addr %s663, 4
      %s667 = sadd.s32 %s665, %s666
      %s668 = smul.addr %s667, 8
      %s669 = scalar_lea.vmem %s18, %s668
      %s670 = smul.u32 2, %s42
      %p671 = scmp.lt.s32.totalorder %s41, 1
      %s672 = scalar_select %p671, %s41, 1
      %p673 = scmp.lt.s32.totalorder %s670, 3
      %s674 = scalar_select %p673, %s670, 3
      %s675 = smul.addr %s672, 4
      %s676 = sadd.s32 %s674, %s675
      %s677 = smul.addr %s676, 4
      %s678 = scalar_lea.vmem %s1, %s677
      %s679 = smul.u32 2, %s42
      %s680 = smul.u32 2, %s42
      %p681 = scmp.lt.s32.totalorder %s41, 1
      %s682 = scalar_select %p681, %s41, 1
      %p683 = scmp.lt.s32.totalorder %s680, 3
      %s684 = scalar_select %p683, %s680, 3
      %s685 = smul.addr %s682, 4
      %s686 = sadd.s32 %s684, %s685
      %s687 = smul.addr %s686, 4
      %s688 = scalar_lea.vmem %s2, %s687
      %s689 = smul.u32 2, %s42
      %s690 = smul.u32 2, %s42
      %p691 = scmp.lt.s32.totalorder %s41, 1
      %s692 = scalar_select %p691, %s41, 1
      %p693 = scmp.lt.s32.totalorder %s690, 3
      %s694 = scalar_select %p693, %s690, 3
      %s695 = smul.addr %s692, 4
      %s696 = sadd.s32 %s694, %s695
      %s697 = smul.addr %s696, 8
      %s698 = scalar_lea.vmem %s3, %s697
      %s699 = smul.u32 2, %s42
      %p700 = scmp.lt.s32.totalorder %s41, 1
      %s701 = scalar_select %p700, %s41, 1
      %s702 = smul.addr %s701, 4
      %s703 = smul.addr %s702, 8
      %s704 = scalar_lea.vmem %s4, %s703
      %s705 = smul.u32 2, %s42
      %p706 = scmp.lt.s32.totalorder %s41, 1
      %s707 = scalar_select %p706, %s41, 1
      %p708 = scmp.lt.s32.totalorder %s705, 3
      %s709 = scalar_select %p708, %s705, 3
      %s710 = smul.addr %s707, 4
      %s711 = sadd.s32 %s709, %s710
      %s712 = smul.addr %s711, 8
      %s713 = scalar_lea.vmem %s5, %s712
      %s714 = smul.u32 2, %s42
      %s715 = smul.u32 2, %s42
      %p716 = scmp.lt.s32.totalorder %s41, 1
      %s717 = scalar_select %p716, %s41, 1
      %p718 = scmp.lt.s32.totalorder %s715, 3
      %s719 = scalar_select %p718, %s715, 3
      %s720 = smul.addr %s717, 4
      %s721 = sadd.s32 %s719, %s720
      %s722 = smul.addr %s721, 8
      %s723 = scalar_lea.vmem %s18, %s722
      %s724 = smul.u32 2, %s42
      %s725 = sld [smem:[#allocation4 + %s41]]
      %s726 = scvt.s32.f32 %s725
      %p727 = scmp.gt.s32.totalorder %s725, 0
      %s728 = scalar_select %p727, 1.0, 0.0
      %s729 = smax.f32 %s726, 1.0
      %v730 = vstv %s729
      %v731 = vrcp.pop %v730
      %s732 = vtos %v731
      %s733 = smul.f32 %s728, %s732
      %v734 = vld [vmem:[%s6] sm:$0xff]
      %v735 = vld [vmem:[%s6 + $0x8] sm:$0xff]
      %v736 = vld [vmem:[%s6 + $0x10] sm:$0xff]
      %v737 = vld [vmem:[%s6 + $0x18] sm:$0xff]
      %v738 = vld [vmem:[%s7] sm:$0xff]
      %v739 = vld [vmem:[%s7 + $0x8] sm:$0xff]
      %v740 = vld [vmem:[%s7 + $0x10] sm:$0xff]
      %v741 = vld [vmem:[%s7 + $0x18] sm:$0xff]
      loop: start=0, step=1, limit=2
      $region89: #{dense_invariant_scale_forward.1} parent=87 // loop_pre_header
        _
      $region90: #{dense_invariant_scale_forward.1} parent=87 // loop_header
        %s743 = sphi 0, %s747
        %p744 = scmp.ge.s32.totalorder %s743, 2
      $region91: #{dense_invariant_scale_forward.1} parent=87 // loop_header_branch
        %746 = sbr.rel (%p744) target = $region95
      $region92: #{dense_invariant_scale_forward.1} parent=87 // loop_body
        %s748 = smul.u32 %s743, 8
        %s749 = sshra.s32 %s748, 3
        %s750 = sand.u32 %s748, 7
        %s751 = smul.addr %s749, 4
        %s752 = scalar_lea.vmem %s678, %s751
        %v753 = vld [vmem:[%s752] sm:$0xf]
        %v754 = vunpack.c.l.bf16 %v753
        %v756 = vcombine.high %v754, %v754
        %v758 = vunpack.c.l.s4 1966171168
        %v759 = vunpack.c.0.s8 %v758
        %v760 = vlaneseq
        %v761 = vshrl.u32 %v760, 7
        %v762 = vsub.s32 %v759, %v761
        %v763 = vrot.slane %v754, %v762
        %v765 = vunpack.c.l.s4 1966171168
        %v766 = vunpack.c.0.s8 %v765
        %v767 = vlaneseq
        %v768 = vshrl.u32 %v767, 7
        %v769 = vsub.s32 %v766, %v768
        %v770 = vrot.slane %v756, %v769
        %v771 = vcombine.high %v763, %v763
        %v772 = vcombine.high %v770, %v770
        %v774 = vunpack.c.l.s4 1966171168
        %v775 = vunpack.c.0.s8 %v774
        %v776 = vlaneseq
        %v777 = vshrl.u32 %v776, 7
        %v778 = vsub.s32 %v775, %v777
        %v779 = vrot.slane %v763, %v778
        %v781 = vunpack.c.l.s4 1966171168
        %v782 = vunpack.c.0.s8 %v781
        %v783 = vlaneseq
        %v784 = vshrl.u32 %v783, 7
        %v785 = vsub.s32 %v782, %v784
        %v786 = vrot.slane %v770, %v785
        %v788 = vunpack.c.l.s4 1966171168
        %v789 = vunpack.c.0.s8 %v788
        %v790 = vlaneseq
        %v791 = vshrl.u32 %v790, 7
        %v792 = vsub.s32 %v789, %v791
        %v793 = vrot.slane %v771, %v792
        %v795 = vunpack.c.l.s4 1966171168
        %v796 = vunpack.c.0.s8 %v795
        %v797 = vlaneseq
        %v798 = vshrl.u32 %v797, 7
        %v799 = vsub.s32 %v796, %v798
        %v800 = vrot.slane %v772, %v799
        %v801 = vcombine.high %v779, %v779
        %v802 = vcombine.high %v786, %v786
        %v803 = vcombine.high %v793, %v793
        %v804 = vcombine.high %v800, %v800
        %s805 = smul.addr %s749, 4
        %s806 = scalar_lea.vmem %s688, %s805
        %v807 = vld [vmem:[%s806] sm:$0xf]
        %v808 = vunpack.c.l.bf16 %v807
        %v810 = vcombine.high %v808, %v808
        %v812 = vunpack.c.l.s4 1966171168
        %v813 = vunpack.c.0.s8 %v812
        %v814 = vlaneseq
        %v815 = vshrl.u32 %v814, 7
        %v816 = vsub.s32 %v813, %v815
        %v817 = vrot.slane %v808, %v816
        %v819 = vunpack.c.l.s4 1966171168
        %v820 = vunpack.c.0.s8 %v819
        %v821 = vlaneseq
        %v822 = vshrl.u32 %v821, 7
        %v823 = vsub.s32 %v820, %v822
        %v824 = vrot.slane %v810, %v823
        %v825 = vcombine.high %v817, %v817
        %v826 = vcombine.high %v824, %v824
        %v828 = vunpack.c.l.s4 1966171168
        %v829 = vunpack.c.0.s8 %v828
        %v830 = vlaneseq
        %v831 = vshrl.u32 %v830, 7
        %v832 = vsub.s32 %v829, %v831
        %v833 = vrot.slane %v817, %v832
        %v835 = vunpack.c.l.s4 1966171168
        %v836 = vunpack.c.0.s8 %v835
        %v837 = vlaneseq
        %v838 = vshrl.u32 %v837, 7
        %v839 = vsub.s32 %v836, %v838
        %v840 = vrot.slane %v824, %v839
        %v842 = vunpack.c.l.s4 1966171168
        %v843 = vunpack.c.0.s8 %v842
        %v844 = vlaneseq
        %v845 = vshrl.u32 %v844, 7
        %v846 = vsub.s32 %v843, %v845
        %v847 = vrot.slane %v825, %v846
        %v849 = vunpack.c.l.s4 1966171168
        %v850 = vunpack.c.0.s8 %v849
        %v851 = vlaneseq
        %v852 = vshrl.u32 %v851, 7
        %v853 = vsub.s32 %v850, %v852
        %v854 = vrot.slane %v826, %v853
        %v855 = vcombine.high %v833, %v833
        %v856 = vcombine.high %v840, %v840
        %v857 = vcombine.high %v847, %v847
        %v858 = vcombine.high %v854, %v854
        %s859 = scalar_lea.vmem %s698, %s748
        %v860 = vld [vmem:[%s859] sm:$0xff]
        %v861 = vlaneseq
        %v862 = vshrl.u32 %v861, 7
        %v863 = vsub.s32 0, %v862
        %v864 = vrot.slane %v860, %v863
        %866 = vbcast.lane.b32.xlu0 %v864, 256
        %v867 = vpop.permute.xlu0 %866
        %s869 = sor.u32 256, 8
        %870 = vbcast.lane.b32.xlu0 %v864, %s869
        %v871 = vpop.permute.xlu0 %870
        %s873 = sor.u32 256, 16
        %874 = vbcast.lane.b32.xlu0 %v864, %s873
        %v875 = vpop.permute.xlu0 %874
        %s877 = sor.u32 256, 24
        %878 = vbcast.lane.b32.xlu0 %v864, %s877
        %v879 = vpop.permute.xlu0 %878
        %v880 = vlaneseq
        %v881 = vshrl.u32 %v880, 7
        %v882 = vsub.s32 1, %v881
        %v883 = vrot.slane %v860, %v882
        %885 = vbcast.lane.b32.xlu0 %v883, 256
        %v886 = vpop.permute.xlu0 %885
        %s888 = sor.u32 256, 8
        %889 = vbcast.lane.b32.xlu0 %v883, %s888
        %v890 = vpop.permute.xlu0 %889
        %s892 = sor.u32 256, 16
        %893 = vbcast.lane.b32.xlu0 %v883, %s892
        %v894 = vpop.permute.xlu0 %893
        %s896 = sor.u32 256, 24
        %897 = vbcast.lane.b32.xlu0 %v883, %s896
        %v898 = vpop.permute.xlu0 %897
        %v899 = vlaneseq
        %v900 = vshrl.u32 %v899, 7
        %v901 = vsub.s32 2, %v900
        %v902 = vrot.slane %v860, %v901
        %904 = vbcast.lane.b32.xlu0 %v902, 256
        %v905 = vpop.permute.xlu0 %904
        %s907 = sor.u32 256, 8
        %908 = vbcast.lane.b32.xlu0 %v902, %s907
        %v909 = vpop.permute.xlu0 %908
        %s911 = sor.u32 256, 16
        %912 = vbcast.lane.b32.xlu0 %v902, %s911
        %v913 = vpop.permute.xlu0 %912
        %s915 = sor.u32 256, 24
        %916 = vbcast.lane.b32.xlu0 %v902, %s915
        %v917 = vpop.permute.xlu0 %916
        %v918 = vlaneseq
        %v919 = vshrl.u32 %v918, 7
        %v920 = vsub.s32 3, %v919
        %v921 = vrot.slane %v860, %v920
        %923 = vbcast.lane.b32.xlu0 %v921, 256
        %v924 = vpop.permute.xlu0 %923
        %s926 = sor.u32 256, 8
        %927 = vbcast.lane.b32.xlu0 %v921, %s926
        %v928 = vpop.permute.xlu0 %927
        %s930 = sor.u32 256, 16
        %931 = vbcast.lane.b32.xlu0 %v921, %s930
        %v932 = vpop.permute.xlu0 %931
        %s934 = sor.u32 256, 24
        %935 = vbcast.lane.b32.xlu0 %v921, %s934
        %v936 = vpop.permute.xlu0 %935
        %v937 = vlaneseq
        %v938 = vshrl.u32 %v937, 7
        %v939 = vsub.s32 4, %v938
        %v940 = vrot.slane %v860, %v939
        %942 = vbcast.lane.b32.xlu0 %v940, 256
        %v943 = vpop.permute.xlu0 %942
        %s945 = sor.u32 256, 8
        %946 = vbcast.lane.b32.xlu0 %v940, %s945
        %v947 = vpop.permute.xlu0 %946
        %s949 = sor.u32 256, 16
        %950 = vbcast.lane.b32.xlu0 %v940, %s949
        %v951 = vpop.permute.xlu0 %950
        %s953 = sor.u32 256, 24
        %954 = vbcast.lane.b32.xlu0 %v940, %s953
        %v955 = vpop.permute.xlu0 %954
        %v956 = vlaneseq
        %v957 = vshrl.u32 %v956, 7
        %v958 = vsub.s32 5, %v957
        %v959 = vrot.slane %v860, %v958
        %961 = vbcast.lane.b32.xlu0 %v959, 256
        %v962 = vpop.permute.xlu0 %961
        %s964 = sor.u32 256, 8
        %965 = vbcast.lane.b32.xlu0 %v959, %s964
        %v966 = vpop.permute.xlu0 %965
        %s968 = sor.u32 256, 16
        %969 = vbcast.lane.b32.xlu0 %v959, %s968
        %v970 = vpop.permute.xlu0 %969
        %s972 = sor.u32 256, 24
        %973 = vbcast.lane.b32.xlu0 %v959, %s972
        %v974 = vpop.permute.xlu0 %973
        %v975 = vlaneseq
        %v976 = vshrl.u32 %v975, 7
        %v977 = vsub.s32 6, %v976
        %v978 = vrot.slane %v860, %v977
        %980 = vbcast.lane.b32.xlu0 %v978, 256
        %v981 = vpop.permute.xlu0 %980
        %s983 = sor.u32 256, 8
        %984 = vbcast.lane.b32.xlu0 %v978, %s983
        %v985 = vpop.permute.xlu0 %984
        %s987 = sor.u32 256, 16
        %988 = vbcast.lane.b32.xlu0 %v978, %s987
        %v989 = vpop.permute.xlu0 %988
        %s991 = sor.u32 256, 24
        %992 = vbcast.lane.b32.xlu0 %v978, %s991
        %v993 = vpop.permute.xlu0 %992
        %v994 = vlaneseq
        %v995 = vshrl.u32 %v994, 7
        %v996 = vsub.s32 7, %v995
        %v997 = vrot.slane %v860, %v996
        %999 = vbcast.lane.b32.xlu0 %v997, 256
        %v1000 = vpop.permute.xlu0 %999
        %s1002 = sor.u32 256, 8
        %1003 = vbcast.lane.b32.xlu0 %v997, %s1002
        %v1004 = vpop.permute.xlu0 %1003
        %s1006 = sor.u32 256, 16
        %1007 = vbcast.lane.b32.xlu0 %v997, %s1006
        %v1008 = vpop.permute.xlu0 %1007
        %s1010 = sor.u32 256, 24
        %1011 = vbcast.lane.b32.xlu0 %v997, %s1010
        %v1012 = vpop.permute.xlu0 %1011
        %v1013 = vld [vmem:[%s704] sm:$0xff]
        %v1014 = vld [vmem:[%s704 + $0x8] sm:$0xff]
        %v1015 = vld [vmem:[%s704 + $0x10] sm:$0xff]
        %v1016 = vld [vmem:[%s704 + $0x18] sm:$0xff]
        %v1017 = vlaneseq
        %v1018 = vshrl.u32 %v1017, 7
        %v1019 = vsub.s32 0, %v1018
        %v1020 = vrot.slane %v779, %v1019
        %v1021 = vlaneseq
        %v1022 = vshrl.u32 %v1021, 7
        %v1023 = vsub.s32 0, %v1022
        %v1024 = vrot.slane %v793, %v1023
        %v1025 = vlaneseq
        %v1026 = vshrl.u32 %v1025, 7
        %v1027 = vsub.s32 0, %v1026
        %v1028 = vrot.slane %v801, %v1027
        %v1029 = vlaneseq
        %v1030 = vshrl.u32 %v1029, 7
        %v1031 = vsub.s32 0, %v1030
        %v1032 = vrot.slane %v803, %v1031
        %v1033 = vlaneseq
        %v1034 = vshrl.u32 %v1033, 7
        %v1035 = vsub.s32 0, %v1034
        %v1036 = vrot.slane %v786, %v1035
        %v1037 = vlaneseq
        %v1038 = vshrl.u32 %v1037, 7
        %v1039 = vsub.s32 0, %v1038
        %v1040 = vrot.slane %v800, %v1039
        %v1041 = vlaneseq
        %v1042 = vshrl.u32 %v1041, 7
        %v1043 = vsub.s32 0, %v1042
        %v1044 = vrot.slane %v802, %v1043
        %v1045 = vlaneseq
        %v1046 = vshrl.u32 %v1045, 7
        %v1047 = vsub.s32 0, %v1046
        %v1048 = vrot.slane %v804, %v1047
        %1058 = vset.pattern.permute.xlu0 0
        %1059 = vperm.xlu0 %1058, %v734
        %v1060 = vpop.permute.xlu0 %1059
        %1063 = vset.pattern.permute.xlu0 0
        %1064 = vperm.xlu0 %1063, %v735
        %v1065 = vpop.permute.xlu0 %1064
        %1068 = vset.pattern.permute.xlu0 0
        %1069 = vperm.xlu0 %1068, %v736
        %v1070 = vpop.permute.xlu0 %1069
        %1073 = vset.pattern.permute.xlu0 0
        %1074 = vperm.xlu0 %1073, %v737
        %v1075 = vpop.permute.xlu0 %1074
        %v1077 = vmul.f32 %v1020, %v1060
        %v1078 = vmul.f32 %v1020, %v1065
        %v1079 = vmul.f32 %v1020, %v1070
        %v1080 = vmul.f32 %v1020, %v1075
        %v1081 = vmul.f32 %v1024, %v1060
        %v1082 = vmul.f32 %v1024, %v1065
        %v1083 = vmul.f32 %v1024, %v1070
        %v1084 = vmul.f32 %v1024, %v1075
        %v1085 = vmul.f32 %v1028, %v1060
        %v1086 = vmul.f32 %v1028, %v1065
        %v1087 = vmul.f32 %v1028, %v1070
        %v1088 = vmul.f32 %v1028, %v1075
        %v1089 = vmul.f32 %v1032, %v1060
        %v1090 = vmul.f32 %v1032, %v1065
        %v1091 = vmul.f32 %v1032, %v1070
        %v1092 = vmul.f32 %v1032, %v1075
        %v1093 = vmul.f32 %v1036, %v1060
        %v1094 = vmul.f32 %v1036, %v1065
        %v1095 = vmul.f32 %v1036, %v1070
        %v1096 = vmul.f32 %v1036, %v1075
        %v1097 = vmul.f32 %v1040, %v1060
        %v1098 = vmul.f32 %v1040, %v1065
        %v1099 = vmul.f32 %v1040, %v1070
        %v1100 = vmul.f32 %v1040, %v1075
        %v1101 = vmul.f32 %v1044, %v1060
        %v1102 = vmul.f32 %v1044, %v1065
        %v1103 = vmul.f32 %v1044, %v1070
        %v1104 = vmul.f32 %v1044, %v1075
        %v1105 = vmul.f32 %v1048, %v1060
        %v1106 = vmul.f32 %v1048, %v1065
        %v1107 = vmul.f32 %v1048, %v1070
        %v1108 = vmul.f32 %v1048, %v1075
        %v1109 = vlaneseq
        %v1110 = vshrl.u32 %v1109, 7
        %v1111 = vsub.s32 0, %v1110
        %v1112 = vrot.slane %v833, %v1111
        %v1113 = vlaneseq
        %v1114 = vshrl.u32 %v1113, 7
        %v1115 = vsub.s32 0, %v1114
        %v1116 = vrot.slane %v847, %v1115
        %v1117 = vlaneseq
        %v1118 = vshrl.u32 %v1117, 7
        %v1119 = vsub.s32 0, %v1118
        %v1120 = vrot.slane %v855, %v1119
        %v1121 = vlaneseq
        %v1122 = vshrl.u32 %v1121, 7
        %v1123 = vsub.s32 0, %v1122
        %v1124 = vrot.slane %v857, %v1123
        %v1125 = vlaneseq
        %v1126 = vshrl.u32 %v1125, 7
        %v1127 = vsub.s32 0, %v1126
        %v1128 = vrot.slane %v840, %v1127
        %v1129 = vlaneseq
        %v1130 = vshrl.u32 %v1129, 7
        %v1131 = vsub.s32 0, %v1130
        %v1132 = vrot.slane %v854, %v1131
        %v1133 = vlaneseq
        %v1134 = vshrl.u32 %v1133, 7
        %v1135 = vsub.s32 0, %v1134
        %v1136 = vrot.slane %v856, %v1135
        %v1137 = vlaneseq
        %v1138 = vshrl.u32 %v1137, 7
        %v1139 = vsub.s32 0, %v1138
        %v1140 = vrot.slane %v858, %v1139
        %1150 = vset.pattern.permute.xlu0 0
        %1151 = vperm.xlu0 %1150, %v738
        %v1152 = vpop.permute.xlu0 %1151
        %1155 = vset.pattern.permute.xlu0 0
        %1156 = vperm.xlu0 %1155, %v739
        %v1157 = vpop.permute.xlu0 %1156
        %1160 = vset.pattern.permute.xlu0 0
        %1161 = vperm.xlu0 %1160, %v740
        %v1162 = vpop.permute.xlu0 %1161
        %1165 = vset.pattern.permute.xlu0 0
        %1166 = vperm.xlu0 %1165, %v741
        %v1167 = vpop.permute.xlu0 %1166
        %v1169 = vmul.f32 %v1112, %v1152
        %v1170 = vmul.f32 %v1112, %v1157
        %v1171 = vmul.f32 %v1112, %v1162
        %v1172 = vmul.f32 %v1112, %v1167
        %v1173 = vmul.f32 %v1116, %v1152
        %v1174 = vmul.f32 %v1116, %v1157
        %v1175 = vmul.f32 %v1116, %v1162
        %v1176 = vmul.f32 %v1116, %v1167
        %v1177 = vmul.f32 %v1120, %v1152
        %v1178 = vmul.f32 %v1120, %v1157
        %v1179 = vmul.f32 %v1120, %v1162
        %v1180 = vmul.f32 %v1120, %v1167
        %v1181 = vmul.f32 %v1124, %v1152
        %v1182 = vmul.f32 %v1124, %v1157
        %v1183 = vmul.f32 %v1124, %v1162
        %v1184 = vmul.f32 %v1124, %v1167
        %v1185 = vmul.f32 %v1128, %v1152
        %v1186 = vmul.f32 %v1128, %v1157
        %v1187 = vmul.f32 %v1128, %v1162
        %v1188 = vmul.f32 %v1128, %v1167
        %v1189 = vmul.f32 %v1132, %v1152
        %v1190 = vmul.f32 %v1132, %v1157
        %v1191 = vmul.f32 %v1132, %v1162
        %v1192 = vmul.f32 %v1132, %v1167
        %v1193 = vmul.f32 %v1136, %v1152
        %v1194 = vmul.f32 %v1136, %v1157
        %v1195 = vmul.f32 %v1136, %v1162
        %v1196 = vmul.f32 %v1136, %v1167
        %v1197 = vmul.f32 %v1140, %v1152
        %v1198 = vmul.f32 %v1140, %v1157
        %v1199 = vmul.f32 %v1140, %v1162
        %v1200 = vmul.f32 %v1140, %v1167
        %v1201 = vadd.f32 %v1077, %v1169
        %v1202 = vadd.f32 %v1078, %v1170
        %v1203 = vadd.f32 %v1079, %v1171
        %v1204 = vadd.f32 %v1080, %v1172
        %v1205 = vadd.f32 %v1081, %v1173
        %v1206 = vadd.f32 %v1082, %v1174
        %v1207 = vadd.f32 %v1083, %v1175
        %v1208 = vadd.f32 %v1084, %v1176
        %v1209 = vadd.f32 %v1085, %v1177
        %v1210 = vadd.f32 %v1086, %v1178
        %v1211 = vadd.f32 %v1087, %v1179
        %v1212 = vadd.f32 %v1088, %v1180
        %v1213 = vadd.f32 %v1089, %v1181
        %v1214 = vadd.f32 %v1090, %v1182
        %v1215 = vadd.f32 %v1091, %v1183
        %v1216 = vadd.f32 %v1092, %v1184
        %v1217 = vadd.f32 %v1093, %v1185
        %v1218 = vadd.f32 %v1094, %v1186
        %v1219 = vadd.f32 %v1095, %v1187
        %v1220 = vadd.f32 %v1096, %v1188
        %v1221 = vadd.f32 %v1097, %v1189
        %v1222 = vadd.f32 %v1098, %v1190
        %v1223 = vadd.f32 %v1099, %v1191
        %v1224 = vadd.f32 %v1100, %v1192
        %v1225 = vadd.f32 %v1101, %v1193
        %v1226 = vadd.f32 %v1102, %v1194
        %v1227 = vadd.f32 %v1103, %v1195
        %v1228 = vadd.f32 %v1104, %v1196
        %v1229 = vadd.f32 %v1105, %v1197
        %v1230 = vadd.f32 %v1106, %v1198
        %v1231 = vadd.f32 %v1107, %v1199
        %v1232 = vadd.f32 %v1108, %v1200
        %v1233 = vadd.f32 %v1201, %v867
        %v1234 = vadd.f32 %v1202, %v871
        %v1235 = vadd.f32 %v1203, %v875
        %v1236 = vadd.f32 %v1204, %v879
        %v1237 = vadd.f32 %v1205, %v886
        %v1238 = vadd.f32 %v1206, %v890
        %v1239 = vadd.f32 %v1207, %v894
        %v1240 = vadd.f32 %v1208, %v898
        %v1241 = vadd.f32 %v1209, %v905
        %v1242 = vadd.f32 %v1210, %v909
        %v1243 = vadd.f32 %v1211, %v913
        %v1244 = vadd.f32 %v1212, %v917
        %v1245 = vadd.f32 %v1213, %v924
        %v1246 = vadd.f32 %v1214, %v928
        %v1247 = vadd.f32 %v1215, %v932
        %v1248 = vadd.f32 %v1216, %v936
        %v1249 = vadd.f32 %v1217, %v943
        %v1250 = vadd.f32 %v1218, %v947
        %v1251 = vadd.f32 %v1219, %v951
        %v1252 = vadd.f32 %v1220, %v955
        %v1253 = vadd.f32 %v1221, %v962
        %v1254 = vadd.f32 %v1222, %v966
        %v1255 = vadd.f32 %v1223, %v970
        %v1256 = vadd.f32 %v1224, %v974
        %v1257 = vadd.f32 %v1225, %v981
        %v1258 = vadd.f32 %v1226, %v985
        %v1259 = vadd.f32 %v1227, %v989
        %v1260 = vadd.f32 %v1228, %v993
        %v1261 = vadd.f32 %v1229, %v1000
        %v1262 = vadd.f32 %v1230, %v1004
        %v1263 = vadd.f32 %v1231, %v1008
        %v1264 = vadd.f32 %v1232, %v1012
        %v1265 = vadd.f32 %v1233, %v1013
        %v1266 = vadd.f32 %v1234, %v1014
        %v1267 = vadd.f32 %v1235, %v1015
        %v1268 = vadd.f32 %v1236, %v1016
        %v1269 = vadd.f32 %v1237, %v1013
        %v1270 = vadd.f32 %v1238, %v1014
        %v1271 = vadd.f32 %v1239, %v1015
        %v1272 = vadd.f32 %v1240, %v1016
        %v1273 = vadd.f32 %v1241, %v1013
        %v1274 = vadd.f32 %v1242, %v1014
        %v1275 = vadd.f32 %v1243, %v1015
        %v1276 = vadd.f32 %v1244, %v1016
        %v1277 = vadd.f32 %v1245, %v1013
        %v1278 = vadd.f32 %v1246, %v1014
        %v1279 = vadd.f32 %v1247, %v1015
        %v1280 = vadd.f32 %v1248, %v1016
        %v1281 = vadd.f32 %v1249, %v1013
        %v1282 = vadd.f32 %v1250, %v1014
        %v1283 = vadd.f32 %v1251, %v1015
        %v1284 = vadd.f32 %v1252, %v1016
        %v1285 = vadd.f32 %v1253, %v1013
        %v1286 = vadd.f32 %v1254, %v1014
        %v1287 = vadd.f32 %v1255, %v1015
        %v1288 = vadd.f32 %v1256, %v1016
        %v1289 = vadd.f32 %v1257, %v1013
        %v1290 = vadd.f32 %v1258, %v1014
        %v1291 = vadd.f32 %v1259, %v1015
        %v1292 = vadd.f32 %v1260, %v1016
        %v1293 = vadd.f32 %v1261, %v1013
        %v1294 = vadd.f32 %v1262, %v1014
        %v1295 = vadd.f32 %v1263, %v1015
        %v1296 = vadd.f32 %v1264, %v1016
        %v1297 = vmax.f32 %v1265, 0.0
        %v1298 = vmax.f32 %v1266, 0.0
        %v1299 = vmax.f32 %v1267, 0.0
        %v1300 = vmax.f32 %v1268, 0.0
        %v1301 = vmax.f32 %v1269, 0.0
        %v1302 = vmax.f32 %v1270, 0.0
        %v1303 = vmax.f32 %v1271, 0.0
        %v1304 = vmax.f32 %v1272, 0.0
        %v1305 = vmax.f32 %v1273, 0.0
        %v1306 = vmax.f32 %v1274, 0.0
        %v1307 = vmax.f32 %v1275, 0.0
        %v1308 = vmax.f32 %v1276, 0.0
        %v1309 = vmax.f32 %v1277, 0.0
        %v1310 = vmax.f32 %v1278, 0.0
        %v1311 = vmax.f32 %v1279, 0.0
        %v1312 = vmax.f32 %v1280, 0.0
        %v1313 = vmax.f32 %v1281, 0.0
        %v1314 = vmax.f32 %v1282, 0.0
        %v1315 = vmax.f32 %v1283, 0.0
        %v1316 = vmax.f32 %v1284, 0.0
        %v1317 = vmax.f32 %v1285, 0.0
        %v1318 = vmax.f32 %v1286, 0.0
        %v1319 = vmax.f32 %v1287, 0.0
        %v1320 = vmax.f32 %v1288, 0.0
        %v1321 = vmax.f32 %v1289, 0.0
        %v1322 = vmax.f32 %v1290, 0.0
        %v1323 = vmax.f32 %v1291, 0.0
        %v1324 = vmax.f32 %v1292, 0.0
        %v1325 = vmax.f32 %v1293, 0.0
        %v1326 = vmax.f32 %v1294, 0.0
        %v1327 = vmax.f32 %v1295, 0.0
        %v1328 = vmax.f32 %v1296, 0.0
        %vm1329 = vcmask 261120
        %v1330 = vsel %vm1329, %v1297, 0.0
        %1331 = vadd.xlane.f32.xlu0 %v1330
        %v1332 = vpop.xlane.xlu0 %1331
        %v1333 = vsel %vm1329, %v1298, 0.0
        %1334 = vadd.xlane.f32.xlu0 %v1333
        %v1335 = vpop.xlane.xlu0 %1334
        %v1336 = vsel %vm1329, %v1299, 0.0
        %1337 = vadd.xlane.f32.xlu0 %v1336
        %v1338 = vpop.xlane.xlu0 %1337
        %v1339 = vsel %vm1329, %v1300, 0.0
        %1340 = vadd.xlane.f32.xlu0 %v1339
        %v1341 = vpop.xlane.xlu0 %1340
        %v1342 = vsel %vm1329, %v1301, 0.0
        %1343 = vadd.xlane.f32.xlu0 %v1342
        %v1344 = vpop.xlane.xlu0 %1343
        %v1345 = vsel %vm1329, %v1302, 0.0
        %1346 = vadd.xlane.f32.xlu0 %v1345
        %v1347 = vpop.xlane.xlu0 %1346
        %v1348 = vsel %vm1329, %v1303, 0.0
        %1349 = vadd.xlane.f32.xlu0 %v1348
        %v1350 = vpop.xlane.xlu0 %1349
        %v1351 = vsel %vm1329, %v1304, 0.0
        %1352 = vadd.xlane.f32.xlu0 %v1351
        %v1353 = vpop.xlane.xlu0 %1352
        %v1354 = vsel %vm1329, %v1305, 0.0
        %1355 = vadd.xlane.f32.xlu0 %v1354
        %v1356 = vpop.xlane.xlu0 %1355
        %v1357 = vsel %vm1329, %v1306, 0.0
        %1358 = vadd.xlane.f32.xlu0 %v1357
        %v1359 = vpop.xlane.xlu0 %1358
        %v1360 = vsel %vm1329, %v1307, 0.0
        %1361 = vadd.xlane.f32.xlu0 %v1360
        %v1362 = vpop.xlane.xlu0 %1361
        %v1363 = vsel %vm1329, %v1308, 0.0
        %1364 = vadd.xlane.f32.xlu0 %v1363
        %v1365 = vpop.xlane.xlu0 %1364
        %v1366 = vsel %vm1329, %v1309, 0.0
        %1367 = vadd.xlane.f32.xlu0 %v1366
        %v1368 = vpop.xlane.xlu0 %1367
        %v1369 = vsel %vm1329, %v1310, 0.0
        %1370 = vadd.xlane.f32.xlu0 %v1369
        %v1371 = vpop.xlane.xlu0 %1370
        %v1372 = vsel %vm1329, %v1311, 0.0
        %1373 = vadd.xlane.f32.xlu0 %v1372
        %v1374 = vpop.xlane.xlu0 %1373
        %v1375 = vsel %vm1329, %v1312, 0.0
        %1376 = vadd.xlane.f32.xlu0 %v1375
        %v1377 = vpop.xlane.xlu0 %1376
        %v1378 = vsel %vm1329, %v1313, 0.0
        %1379 = vadd.xlane.f32.xlu0 %v1378
        %v1380 = vpop.xlane.xlu0 %1379
        %v1381 = vsel %vm1329, %v1314, 0.0
        %1382 = vadd.xlane.f32.xlu0 %v1381
        %v1383 = vpop.xlane.xlu0 %1382
        %v1384 = vsel %vm1329, %v1315, 0.0
        %1385 = vadd.xlane.f32.xlu0 %v1384
        %v1386 = vpop.xlane.xlu0 %1385
        %v1387 = vsel %vm1329, %v1316, 0.0
        %1388 = vadd.xlane.f32.xlu0 %v1387
        %v1389 = vpop.xlane.xlu0 %1388
        %v1390 = vsel %vm1329, %v1317, 0.0
        %1391 = vadd.xlane.f32.xlu0 %v1390
        %v1392 = vpop.xlane.xlu0 %1391
        %v1393 = vsel %vm1329, %v1318, 0.0
        %1394 = vadd.xlane.f32.xlu0 %v1393
        %v1395 = vpop.xlane.xlu0 %1394
        %v1396 = vsel %vm1329, %v1319, 0.0
        %1397 = vadd.xlane.f32.xlu0 %v1396
        %v1398 = vpop.xlane.xlu0 %1397
        %v1399 = vsel %vm1329, %v1320, 0.0
        %1400 = vadd.xlane.f32.xlu0 %v1399
        %v1401 = vpop.xlane.xlu0 %1400
        %v1402 = vsel %vm1329, %v1321, 0.0
        %1403 = vadd.xlane.f32.xlu0 %v1402
        %v1404 = vpop.xlane.xlu0 %1403
        %v1405 = vsel %vm1329, %v1322, 0.0
        %1406 = vadd.xlane.f32.xlu0 %v1405
        %v1407 = vpop.xlane.xlu0 %1406
        %v1408 = vsel %vm1329, %v1323, 0.0
        %1409 = vadd.xlane.f32.xlu0 %v1408
        %v1410 = vpop.xlane.xlu0 %1409
        %v1411 = vsel %vm1329, %v1324, 0.0
        %1412 = vadd.xlane.f32.xlu0 %v1411
        %v1413 = vpop.xlane.xlu0 %1412
        %v1414 = vsel %vm1329, %v1325, 0.0
        %1415 = vadd.xlane.f32.xlu0 %v1414
        %v1416 = vpop.xlane.xlu0 %1415
        %v1417 = vsel %vm1329, %v1326, 0.0
        %1418 = vadd.xlane.f32.xlu0 %v1417
        %v1419 = vpop.xlane.xlu0 %1418
        %v1420 = vsel %vm1329, %v1327, 0.0
        %1421 = vadd.xlane.f32.xlu0 %v1420
        %v1422 = vpop.xlane.xlu0 %1421
        %v1423 = vsel %vm1329, %v1328, 0.0
        %1424 = vadd.xlane.f32.xlu0 %v1423
        %v1425 = vpop.xlane.xlu0 %1424
        %v1458 = vlaneseq
        %v1459 = vand.u32 %v1458, 127
        %v1460 = vlaneseq
        %v1461 = vshrl.u32 %v1460, 7
        %v1462 = vsub.s32 %v1459, %v1461
        %v1463 = vrot.slane %v1332, %v1462
        %v1464 = vadd.s32 %v1459, 4294967288
        %v1465 = vlaneseq
        %v1466 = vshrl.u32 %v1465, 7
        %v1467 = vsub.s32 %v1464, %v1466
        %v1468 = vrot.slane %v1335, %v1467
        %vm1469 = vcmask 130112
        %v1470 = vsel %vm1469, %v1468, %v1463
        %v1471 = vadd.s32 %v1459, 4294967280
        %v1472 = vlaneseq
        %v1473 = vshrl.u32 %v1472, 7
        %v1474 = vsub.s32 %v1471, %v1473
        %v1475 = vrot.slane %v1338, %v1474
        %vm1476 = vcmask 195712
        %v1477 = vsel %vm1476, %v1475, %v1470
        %v1478 = vadd.s32 %v1459, 4294967272
        %v1479 = vlaneseq
        %v1480 = vshrl.u32 %v1479, 7
        %v1481 = vsub.s32 %v1478, %v1480
        %v1482 = vrot.slane %v1341, %v1481
        %vm1483 = vcmask 261312
        %v1484 = vsel %vm1483, %v1482, %v1477
        %v1485 = vlaneseq
        %v1486 = vshrl.u32 %v1485, 7
        %v1487 = vsub.s32 %v1459, %v1486
        %v1488 = vrot.slane %v1344, %v1487
        %v1489 = vlaneseq
        %v1490 = vshrl.u32 %v1489, 7
        %v1491 = vsub.s32 %v1464, %v1490
        %v1492 = vrot.slane %v1347, %v1491
        %v1493 = vsel %vm1469, %v1492, %v1488
        %v1494 = vlaneseq
        %v1495 = vshrl.u32 %v1494, 7
        %v1496 = vsub.s32 %v1471, %v1495
        %v1497 = vrot.slane %v1350, %v1496
        %v1498 = vsel %vm1476, %v1497, %v1493
        %v1499 = vlaneseq
        %v1500 = vshrl.u32 %v1499, 7
        %v1501 = vsub.s32 %v1478, %v1500
        %v1502 = vrot.slane %v1353, %v1501
        %v1503 = vsel %vm1483, %v1502, %v1498
        %v1504 = vlaneseq
        %v1505 = vshrl.u32 %v1504, 7
        %v1506 = vsub.s32 %v1459, %v1505
        %v1507 = vrot.slane %v1356, %v1506
        %v1508 = vlaneseq
        %v1509 = vshrl.u32 %v1508, 7
        %v1510 = vsub.s32 %v1464, %v1509
        %v1511 = vrot.slane %v1359, %v1510
        %v1512 = vsel %vm1469, %v1511, %v1507
        %v1513 = vlaneseq
        %v1514 = vshrl.u32 %v1513, 7
        %v1515 = vsub.s32 %v1471, %v1514
        %v1516 = vrot.slane %v1362, %v1515
        %v1517 = vsel %vm1476, %v1516, %v1512
        %v1518 = vlaneseq
        %v1519 = vshrl.u32 %v1518, 7
        %v1520 = vsub.s32 %v1478, %v1519
        %v1521 = vrot.slane %v1365, %v1520
        %v1522 = vsel %vm1483, %v1521, %v1517
        %v1523 = vlaneseq
        %v1524 = vshrl.u32 %v1523, 7
        %v1525 = vsub.s32 %v1459, %v1524
        %v1526 = vrot.slane %v1368, %v1525
        %v1527 = vlaneseq
        %v1528 = vshrl.u32 %v1527, 7
        %v1529 = vsub.s32 %v1464, %v1528
        %v1530 = vrot.slane %v1371, %v1529
        %v1531 = vsel %vm1469, %v1530, %v1526
        %v1532 = vlaneseq
        %v1533 = vshrl.u32 %v1532, 7
        %v1534 = vsub.s32 %v1471, %v1533
        %v1535 = vrot.slane %v1374, %v1534
        %v1536 = vsel %vm1476, %v1535, %v1531
        %v1537 = vlaneseq
        %v1538 = vshrl.u32 %v1537, 7
        %v1539 = vsub.s32 %v1478, %v1538
        %v1540 = vrot.slane %v1377, %v1539
        %v1541 = vsel %vm1483, %v1540, %v1536
        %v1542 = vlaneseq
        %v1543 = vshrl.u32 %v1542, 7
        %v1544 = vsub.s32 %v1459, %v1543
        %v1545 = vrot.slane %v1380, %v1544
        %v1546 = vlaneseq
        %v1547 = vshrl.u32 %v1546, 7
        %v1548 = vsub.s32 %v1464, %v1547
        %v1549 = vrot.slane %v1383, %v1548
        %v1550 = vsel %vm1469, %v1549, %v1545
        %v1551 = vlaneseq
        %v1552 = vshrl.u32 %v1551, 7
        %v1553 = vsub.s32 %v1471, %v1552
        %v1554 = vrot.slane %v1386, %v1553
        %v1555 = vsel %vm1476, %v1554, %v1550
        %v1556 = vlaneseq
        %v1557 = vshrl.u32 %v1556, 7
        %v1558 = vsub.s32 %v1478, %v1557
        %v1559 = vrot.slane %v1389, %v1558
        %v1560 = vsel %vm1483, %v1559, %v1555
        %v1561 = vlaneseq
        %v1562 = vshrl.u32 %v1561, 7
        %v1563 = vsub.s32 %v1459, %v1562
        %v1564 = vrot.slane %v1392, %v1563
        %v1565 = vlaneseq
        %v1566 = vshrl.u32 %v1565, 7
        %v1567 = vsub.s32 %v1464, %v1566
        %v1568 = vrot.slane %v1395, %v1567
        %v1569 = vsel %vm1469, %v1568, %v1564
        %v1570 = vlaneseq
        %v1571 = vshrl.u32 %v1570, 7
        %v1572 = vsub.s32 %v1471, %v1571
        %v1573 = vrot.slane %v1398, %v1572
        %v1574 = vsel %vm1476, %v1573, %v1569
        %v1575 = vlaneseq
        %v1576 = vshrl.u32 %v1575, 7
        %v1577 = vsub.s32 %v1478, %v1576
        %v1578 = vrot.slane %v1401, %v1577
        %v1579 = vsel %vm1483, %v1578, %v1574
        %v1580 = vlaneseq
        %v1581 = vshrl.u32 %v1580, 7
        %v1582 = vsub.s32 %v1459, %v1581
        %v1583 = vrot.slane %v1404, %v1582
        %v1584 = vlaneseq
        %v1585 = vshrl.u32 %v1584, 7
        %v1586 = vsub.s32 %v1464, %v1585
        %v1587 = vrot.slane %v1407, %v1586
        %v1588 = vsel %vm1469, %v1587, %v1583
        %v1589 = vlaneseq
        %v1590 = vshrl.u32 %v1589, 7
        %v1591 = vsub.s32 %v1471, %v1590
        %v1592 = vrot.slane %v1410, %v1591
        %v1593 = vsel %vm1476, %v1592, %v1588
        %v1594 = vlaneseq
        %v1595 = vshrl.u32 %v1594, 7
        %v1596 = vsub.s32 %v1478, %v1595
        %v1597 = vrot.slane %v1413, %v1596
        %v1598 = vsel %vm1483, %v1597, %v1593
        %v1599 = vlaneseq
        %v1600 = vshrl.u32 %v1599, 7
        %v1601 = vsub.s32 %v1459, %v1600
        %v1602 = vrot.slane %v1416, %v1601
        %v1603 = vlaneseq
        %v1604 = vshrl.u32 %v1603, 7
        %v1605 = vsub.s32 %v1464, %v1604
        %v1606 = vrot.slane %v1419, %v1605
        %v1607 = vsel %vm1469, %v1606, %v1602
        %v1608 = vlaneseq
        %v1609 = vshrl.u32 %v1608, 7
        %v1610 = vsub.s32 %v1471, %v1609
        %v1611 = vrot.slane %v1422, %v1610
        %v1612 = vsel %vm1476, %v1611, %v1607
        %v1613 = vlaneseq
        %v1614 = vshrl.u32 %v1613, 7
        %v1615 = vsub.s32 %v1478, %v1614
        %v1616 = vrot.slane %v1425, %v1615
        %v1617 = vsel %vm1483, %v1616, %v1612
        %vm1618 = vcmask 1041409
        %v1619 = vsel %vm1618, %v1503, %v1484
        %vm1620 = vcmask 1042434
        %v1621 = vsel %vm1620, %v1522, %v1619
        %vm1622 = vcmask 1043459
        %v1623 = vsel %vm1622, %v1541, %v1621
        %vm1624 = vcmask 1044484
        %v1625 = vsel %vm1624, %v1560, %v1623
        %vm1626 = vcmask 1045509
        %v1627 = vsel %vm1626, %v1579, %v1625
        %vm1628 = vcmask 1046534
        %v1629 = vsel %vm1628, %v1598, %v1627
        %vm1630 = vcmask 1047559
        %v1631 = vsel %vm1630, %v1617, %v1629
        %s1633 = scalar_lea.vmem [#allocation2], %s748
        %1634 = vst.msk [vmem:[%s1633] sm:$0xff] %vm1329, %v1631
      $region93: #{dense_invariant_scale_forward.1} parent=87 // loop_footer
        %s747 = sadd.s32 1, %s743
      $region94: #{dense_invariant_scale_forward.1} parent=87 // loop_footer_branch
        %742 = sbr.rel target = $region90
      $region95: #{dense_invariant_scale_forward.1} parent=87 // loop_exit
        _
      %v1635 = vld [vmem:[#allocation2] sm:$0xff]
      %v1636 = vld [vmem:[#allocation2 + $0x8] sm:$0xff]
      %v1637 = vstv %s733
      %v1638 = vmul.f32 %v1635, %v1637
      %v1639 = vmul.f32 %v1636, %v1637
      %v1640 = vld [vmem:[%s8] sm:$0xff]
      %v1641 = vld [vmem:[%s8 + $0x8] sm:$0xff]
      %v1642 = vld [vmem:[%s8 + $0x10] sm:$0xff]
      %v1643 = vld [vmem:[%s8 + $0x18] sm:$0xff]
      %v1644 = vld [vmem:[%s9] sm:$0x1]
      %v1645 = vstv %s728
      %v1646 = vmul.f32 %v1644, %v1645
      %v1648 = vlaneseq
      %v1649 = vshrl.u32 %v1648, 7
      %v1650 = vsub.s32 0, %v1649
      %v1651 = vrot.slane %v1646, %v1650
      %vm1653 = vcmask 261120
      %v1655 = vsel %vm1653, %v1638, 0
      %v1658 = vsel %vm1653, %v1639, 0
      %1660 = vmatprep.subr.mxu0 0.0
      %1661 = vmatpush1.msra.mxu0 %v1640
      %1662 = vmatprep.subr.mxu0 0.0
      %1663 = vmatpush1.msra.mxu0 %v1641
      %1664 = vmatprep.subr.mxu0 0.0
      %1665 = vmatpush1.msra.mxu0 %v1642
      %1666 = vmatprep.subr.mxu0 0.0
      %1667 = vmatpush1.msra.mxu0 %v1643
      %1668 = vmatprep.subr.mxu0 0.0
      %1669 = vmatpush1.msra.mxu0 0.0
      %1670 = vmatprep.subr.mxu0 0.0
      %1671 = vmatpush1.msra.mxu0 0.0
      %1672 = vmatprep.subr.mxu0 0.0
      %1673 = vmatpush1.msra.mxu0 0.0
      %1674 = vmatprep.subr.mxu0 0.0
      %1675 = vmatpush1.msra.mxu0 0.0
      %1676 = vmatprep.subr.mxu0 0.0
      %1677 = vmatpush1.msra.mxu0 0.0
      %1678 = vmatprep.subr.mxu0 0.0
      %1679 = vmatpush1.msra.mxu0 0.0
      %1680 = vmatprep.subr.mxu0 0.0
      %1681 = vmatpush1.msra.mxu0 0.0
      %1682 = vmatprep.subr.mxu0 0.0
      %1683 = vmatpush1.msra.mxu0 0.0
      %1684 = vmatprep.subr.mxu0 0.0
      %1685 = vmatpush1.msra.mxu0 0.0
      %1686 = vmatprep.subr.mxu0 0.0
      %1687 = vmatpush1.msra.mxu0 0.0
      %1688 = vmatprep.subr.mxu0 0.0
      %1689 = vmatpush1.msra.mxu0 0.0
      %1690 = vmatprep.subr.mxu0 0.0
      %1691 = vmatpush1.msra.mxu0 0.0
      %1692 = vmatprep.subr.mxu0 0.0
      %1693 = vmatpush1.msra.mxu0 0.0
      %1694 = vmatprep.subr.mxu0 0.0
      %1695 = vmatpush1.msra.mxu0 0.0
      %1696 = vmatprep.subr.mxu0 0.0
      %1697 = vmatpush1.msra.mxu0 0.0
      %1698 = vmatprep.subr.mxu0 0.0
      %1699 = vmatpush1.msra.mxu0 0.0
      %1700 = vmatprep.subr.mxu0 0.0
      %1701 = vmatpush1.msra.mxu0 0.0
      %1702 = vmatprep.subr.mxu0 0.0
      %1703 = vmatpush1.msra.mxu0 0.0
      %1704 = vmatprep.subr.mxu0 0.0
      %1705 = vmatpush1.msra.mxu0 0.0
      %1706 = vmatprep.subr.mxu0 0.0
      %1707 = vmatpush1.msra.mxu0 0.0
      %1708 = vmatprep.subr.mxu0 0.0
      %1709 = vmatpush1.msra.mxu0 0.0
      %1710 = vmatprep.subr.mxu0 0.0
      %1711 = vmatpush1.msra.mxu0 0.0
      %1712 = vmatprep.subr.mxu0 0.0
      %1713 = vmatpush1.msra.mxu0 0.0
      %1714 = vmatprep.subr.mxu0 0.0
      %1715 = vmatpush1.msra.mxu0 0.0
      %1716 = vmatprep.subr.mxu0 0.0
      %1717 = vmatpush1.msra.mxu0 0.0
      %1718 = vmatprep.subr.mxu0 0.0
      %1719 = vmatpush1.msra.mxu0 0.0
      %1720 = vmatprep.subr.mxu0 0.0
      %1721 = vmatpush1.msra.mxu0 0.0
      %1722 = vmatprep.subr.mxu0 0.0
      %1723 = vmatpush1.msra.mxu0 0.0
      %1724 = vmatprep.mubr.f32.mxu0 0.0
      %1725 = vmatmul.mubr.f32.gmra.mrb[0].mxu0 %v1655
      %v1726 = vpop.f32.mrb[0].mxu0
      %v1727 = vadd.f32 %v1651, %v1726
      %v1728 = vpop.f32.mrb[0].mxu0
      %1729 = vmatprep.mubr.f32.mxu0 0.0
      %1730 = vmatmul.mubr.f32.gmra.mrb[0].mxu0 %v1658
      %v1731 = vpop.f32.mrb[0].mxu0
      %v1732 = vadd.f32 %v1651, %v1731
      %v1733 = vpop.f32.mrb[0].mxu0
      %1734 = vdwg.mxu0
      %v1735 = vld [vmem:[%s713] sm:$0xff]
      %v1736 = vld [vmem:[%s713 + $0x8] sm:$0xff]
      %v1737 = vld [vmem:[%s10] sm:$0xff]
      %v1738 = vld [vmem:[%s10 + $0x8] sm:$0xff]
      %v1739 = vld [vmem:[%s10 + $0x10] sm:$0xff]
      %v1740 = vld [vmem:[%s10 + $0x18] sm:$0xff]
      %v1741 = vld [vmem:[%s11] sm:$0x1]
      %v1743 = vlaneseq
      %v1744 = vshrl.u32 %v1743, 7
      %v1745 = vsub.s32 0, %v1744
      %v1746 = vrot.slane %v1741, %v1745
      %v1749 = vsel %vm1653, %v1735, 0
      %v1752 = vsel %vm1653, %v1736, 0
      %1754 = vmatprep.subr.mxu0 0.0
      %1755 = vmatpush1.msra.mxu0 %v1737
      %1756 = vmatprep.subr.mxu0 0.0
      %1757 = vmatpush1.msra.mxu0 %v1738
      %1758 = vmatprep.subr.mxu0 0.0
      %1759 = vmatpush1.msra.mxu0 %v1739
      %1760 = vmatprep.subr.mxu0 0.0
      %1761 = vmatpush1.msra.mxu0 %v1740
      %1762 = vmatprep.subr.mxu0 0.0
      %1763 = vmatpush1.msra.mxu0 0.0
      %1764 = vmatprep.subr.mxu0 0.0
      %1765 = vmatpush1.msra.mxu0 0.0
      %1766 = vmatprep.subr.mxu0 0.0
      %1767 = vmatpush1.msra.mxu0 0.0
      %1768 = vmatprep.subr.mxu0 0.0
      %1769 = vmatpush1.msra.mxu0 0.0
      %1770 = vmatprep.subr.mxu0 0.0
      %1771 = vmatpush1.msra.mxu0 0.0
      %1772 = vmatprep.subr.mxu0 0.0
      %1773 = vmatpush1.msra.mxu0 0.0
      %1774 = vmatprep.subr.mxu0 0.0
      %1775 = vmatpush1.msra.mxu0 0.0
      %1776 = vmatprep.subr.mxu0 0.0
      %1777 = vmatpush1.msra.mxu0 0.0
      %1778 = vmatprep.subr.mxu0 0.0
      %1779 = vmatpush1.msra.mxu0 0.0
      %1780 = vmatprep.subr.mxu0 0.0
      %1781 = vmatpush1.msra.mxu0 0.0
      %1782 = vmatprep.subr.mxu0 0.0
      %1783 = vmatpush1.msra.mxu0 0.0
      %1784 = vmatprep.subr.mxu0 0.0
      %1785 = vmatpush1.msra.mxu0 0.0
      %1786 = vmatprep.subr.mxu0 0.0
      %1787 = vmatpush1.msra.mxu0 0.0
      %1788 = vmatprep.subr.mxu0 0.0
      %1789 = vmatpush1.msra.mxu0 0.0
      %1790 = vmatprep.subr.mxu0 0.0
      %1791 = vmatpush1.msra.mxu0 0.0
      %1792 = vmatprep.subr.mxu0 0.0
      %1793 = vmatpush1.msra.mxu0 0.0
      %1794 = vmatprep.subr.mxu0 0.0
      %1795 = vmatpush1.msra.mxu0 0.0
      %1796 = vmatprep.subr.mxu0 0.0
      %1797 = vmatpush1.msra.mxu0 0.0
      %1798 = vmatprep.subr.mxu0 0.0
      %1799 = vmatpush1.msra.mxu0 0.0
      %1800 = vmatprep.subr.mxu0 0.0
      %1801 = vmatpush1.msra.mxu0 0.0
      %1802 = vmatprep.subr.mxu0 0.0
      %1803 = vmatpush1.msra.mxu0 0.0
      %1804 = vmatprep.subr.mxu0 0.0
      %1805 = vmatpush1.msra.mxu0 0.0
      %1806 = vmatprep.subr.mxu0 0.0
      %1807 = vmatpush1.msra.mxu0 0.0
      %1808 = vmatprep.subr.mxu0 0.0
      %1809 = vmatpush1.msra.mxu0 0.0
      %1810 = vmatprep.subr.mxu0 0.0
      %1811 = vmatpush1.msra.mxu0 0.0
      %1812 = vmatprep.subr.mxu0 0.0
      %1813 = vmatpush1.msra.mxu0 0.0
      %1814 = vmatprep.subr.mxu0 0.0
      %1815 = vmatpush1.msra.mxu0 0.0
      %1816 = vmatprep.subr.mxu0 0.0
      %1817 = vmatpush1.msra.mxu0 0.0
      %1818 = vmatprep.mubr.f32.mxu0 0.0
      %1819 = vmatmul.mubr.f32.gmra.mrb[0].mxu0 %v1749
      %v1820 = vpop.f32.mrb[0].mxu0
      %v1821 = vadd.f32 %v1746, %v1820
      %v1822 = vpop.f32.mrb[0].mxu0
      %1823 = vmatprep.mubr.f32.mxu0 0.0
      %1824 = vmatmul.mubr.f32.gmra.mrb[0].mxu0 %v1752
      %v1825 = vpop.f32.mrb[0].mxu0
      %v1826 = vadd.f32 %v1746, %v1825
      %v1827 = vpop.f32.mrb[0].mxu0
      %1828 = vdwg.mxu0
      %v1829 = vmax.f32 %v1821, 0.0
      %v1830 = vmax.f32 %v1826, 0.0
      %v1831 = vld [vmem:[%s12] sm:$0xff]
      %v1832 = vld [vmem:[%s12 + $0x8] sm:$0xff]
      %v1833 = vld [vmem:[%s12 + $0x10] sm:$0xff]
      %v1834 = vld [vmem:[%s12 + $0x18] sm:$0xff]
      %v1835 = vld [vmem:[%s13] sm:$0x1]
      %v1837 = vlaneseq
      %v1838 = vshrl.u32 %v1837, 7
      %v1839 = vsub.s32 0, %v1838
      %v1840 = vrot.slane %v1835, %v1839
      %v1843 = vsel %vm1653, %v1829, 0
      %v1846 = vsel %vm1653, %v1830, 0
      %1848 = vmatprep.subr.mxu0 0.0
      %1849 = vmatpush1.msra.mxu0 %v1831
      %1850 = vmatprep.subr.mxu0 0.0
      %1851 = vmatpush1.msra.mxu0 %v1832
      %1852 = vmatprep.subr.mxu0 0.0
      %1853 = vmatpush1.msra.mxu0 %v1833
      %1854 = vmatprep.subr.mxu0 0.0
      %1855 = vmatpush1.msra.mxu0 %v1834
      %1856 = vmatprep.subr.mxu0 0.0
      %1857 = vmatpush1.msra.mxu0 0.0
      %1858 = vmatprep.subr.mxu0 0.0
      %1859 = vmatpush1.msra.mxu0 0.0
      %1860 = vmatprep.subr.mxu0 0.0
      %1861 = vmatpush1.msra.mxu0 0.0
      %1862 = vmatprep.subr.mxu0 0.0
      %1863 = vmatpush1.msra.mxu0 0.0
      %1864 = vmatprep.subr.mxu0 0.0
      %1865 = vmatpush1.msra.mxu0 0.0
      %1866 = vmatprep.subr.mxu0 0.0
      %1867 = vmatpush1.msra.mxu0 0.0
      %1868 = vmatprep.subr.mxu0 0.0
      %1869 = vmatpush1.msra.mxu0 0.0
      %1870 = vmatprep.subr.mxu0 0.0
      %1871 = vmatpush1.msra.mxu0 0.0
      %1872 = vmatprep.subr.mxu0 0.0
      %1873 = vmatpush1.msra.mxu0 0.0
      %1874 = vmatprep.subr.mxu0 0.0
      %1875 = vmatpush1.msra.mxu0 0.0
      %1876 = vmatprep.subr.mxu0 0.0
      %1877 = vmatpush1.msra.mxu0 0.0
      %1878 = vmatprep.subr.mxu0 0.0
      %1879 = vmatpush1.msra.mxu0 0.0
      %1880 = vmatprep.subr.mxu0 0.0
      %1881 = vmatpush1.msra.mxu0 0.0
      %1882 = vmatprep.subr.mxu0 0.0
      %1883 = vmatpush1.msra.mxu0 0.0
      %1884 = vmatprep.subr.mxu0 0.0
      %1885 = vmatpush1.msra.mxu0 0.0
      %1886 = vmatprep.subr.mxu0 0.0
      %1887 = vmatpush1.msra.mxu0 0.0
      %1888 = vmatprep.subr.mxu0 0.0
      %1889 = vmatpush1.msra.mxu0 0.0
      %1890 = vmatprep.subr.mxu0 0.0
      %1891 = vmatpush1.msra.mxu0 0.0
      %1892 = vmatprep.subr.mxu0 0.0
      %1893 = vmatpush1.msra.mxu0 0.0
      %1894 = vmatprep.subr.mxu0 0.0
      %1895 = vmatpush1.msra.mxu0 0.0
      %1896 = vmatprep.subr.mxu0 0.0
      %1897 = vmatpush1.msra.mxu0 0.0
      %1898 = vmatprep.subr.mxu0 0.0
      %1899 = vmatpush1.msra.mxu0 0.0
      %1900 = vmatprep.subr.mxu0 0.0
      %1901 = vmatpush1.msra.mxu0 0.0
      %1902 = vmatprep.subr.mxu0 0.0
      %1903 = vmatpush1.msra.mxu0 0.0
      %1904 = vmatprep.subr.mxu0 0.0
      %1905 = vmatpush1.msra.mxu0 0.0
      %1906 = vmatprep.subr.mxu0 0.0
      %1907 = vmatpush1.msra.mxu0 0.0
      %1908 = vmatprep.subr.mxu0 0.0
      %1909 = vmatpush1.msra.mxu0 0.0
      %1910 = vmatprep.subr.mxu0 0.0
      %1911 = vmatpush1.msra.mxu0 0.0
      %1912 = vmatprep.mubr.f32.mxu0 0.0
      %1913 = vmatmul.mubr.f32.gmra.mrb[0].mxu0 %v1843
      %v1914 = vpop.f32.mrb[0].mxu0
      %v1915 = vadd.f32 %v1840, %v1914
      %v1916 = vpop.f32.mrb[0].mxu0
      %1917 = vmatprep.mubr.f32.mxu0 0.0
      %1918 = vmatmul.mubr.f32.gmra.mrb[0].mxu0 %v1846
      %v1919 = vpop.f32.mrb[0].mxu0
      %v1920 = vadd.f32 %v1840, %v1919
      %v1921 = vpop.f32.mrb[0].mxu0
      %1922 = vdwg.mxu0
      %v1923 = vadd.f32 %v1915, %v1727
      %v1924 = vadd.f32 %v1920, %v1732
      %v1925 = vld [vmem:[%s14] sm:$0xff]
      %v1926 = vld [vmem:[%s14 + $0x8] sm:$0xff]
      %v1927 = vld [vmem:[%s14 + $0x10] sm:$0xff]
      %v1928 = vld [vmem:[%s14 + $0x18] sm:$0xff]
      %v1929 = vld [vmem:[%s15] sm:$0x1]
      %v1931 = vlaneseq
      %v1932 = vshrl.u32 %v1931, 7
      %v1933 = vsub.s32 0, %v1932
      %v1934 = vrot.slane %v1929, %v1933
      %v1937 = vsel %vm1653, %v1923, 0
      %v1940 = vsel %vm1653, %v1924, 0
      %1942 = vmatprep.subr.mxu0 0.0
      %1943 = vmatpush1.msra.mxu0 %v1925
      %1944 = vmatprep.subr.mxu0 0.0
      %1945 = vmatpush1.msra.mxu0 %v1926
      %1946 = vmatprep.subr.mxu0 0.0
      %1947 = vmatpush1.msra.mxu0 %v1927
      %1948 = vmatprep.subr.mxu0 0.0
      %1949 = vmatpush1.msra.mxu0 %v1928
      %1950 = vmatprep.subr.mxu0 0.0
      %1951 = vmatpush1.msra.mxu0 0.0
      %1952 = vmatprep.subr.mxu0 0.0
      %1953 = vmatpush1.msra.mxu0 0.0
      %1954 = vmatprep.subr.mxu0 0.0
      %1955 = vmatpush1.msra.mxu0 0.0
      %1956 = vmatprep.subr.mxu0 0.0
      %1957 = vmatpush1.msra.mxu0 0.0
      %1958 = vmatprep.subr.mxu0 0.0
      %1959 = vmatpush1.msra.mxu0 0.0
      %1960 = vmatprep.subr.mxu0 0.0
      %1961 = vmatpush1.msra.mxu0 0.0
      %1962 = vmatprep.subr.mxu0 0.0
      %1963 = vmatpush1.msra.mxu0 0.0
      %1964 = vmatprep.subr.mxu0 0.0
      %1965 = vmatpush1.msra.mxu0 0.0
      %1966 = vmatprep.subr.mxu0 0.0
      %1967 = vmatpush1.msra.mxu0 0.0
      %1968 = vmatprep.subr.mxu0 0.0
      %1969 = vmatpush1.msra.mxu0 0.0
      %1970 = vmatprep.subr.mxu0 0.0
      %1971 = vmatpush1.msra.mxu0 0.0
      %1972 = vmatprep.subr.mxu0 0.0
      %1973 = vmatpush1.msra.mxu0 0.0
      %1974 = vmatprep.subr.mxu0 0.0
      %1975 = vmatpush1.msra.mxu0 0.0
      %1976 = vmatprep.subr.mxu0 0.0
      %1977 = vmatpush1.msra.mxu0 0.0
      %1978 = vmatprep.subr.mxu0 0.0
      %1979 = vmatpush1.msra.mxu0 0.0
      %1980 = vmatprep.subr.mxu0 0.0
      %1981 = vmatpush1.msra.mxu0 0.0
      %1982 = vmatprep.subr.mxu0 0.0
      %1983 = vmatpush1.msra.mxu0 0.0
      %1984 = vmatprep.subr.mxu0 0.0
      %1985 = vmatpush1.msra.mxu0 0.0
      %1986 = vmatprep.subr.mxu0 0.0
      %1987 = vmatpush1.msra.mxu0 0.0
      %1988 = vmatprep.subr.mxu0 0.0
      %1989 = vmatpush1.msra.mxu0 0.0
      %1990 = vmatprep.subr.mxu0 0.0
      %1991 = vmatpush1.msra.mxu0 0.0
      %1992 = vmatprep.subr.mxu0 0.0
      %1993 = vmatpush1.msra.mxu0 0.0
      %1994 = vmatprep.subr.mxu0 0.0
      %1995 = vmatpush1.msra.mxu0 0.0
      %1996 = vmatprep.subr.mxu0 0.0
      %1997 = vmatpush1.msra.mxu0 0.0
      %1998 = vmatprep.subr.mxu0 0.0
      %1999 = vmatpush1.msra.mxu0 0.0
      %2000 = vmatprep.subr.mxu0 0.0
      %2001 = vmatpush1.msra.mxu0 0.0
      %2002 = vmatprep.subr.mxu0 0.0
      %2003 = vmatpush1.msra.mxu0 0.0
      %2004 = vmatprep.subr.mxu0 0.0
      %2005 = vmatpush1.msra.mxu0 0.0
      %2006 = vmatprep.mubr.f32.mxu0 0.0
      %2007 = vmatmul.mubr.f32.gmra.mrb[0].mxu0 %v1937
      %v2008 = vpop.f32.mrb[0].mxu0
      %v2009 = vadd.f32 %v1934, %v2008
      %v2010 = vpop.f32.mrb[0].mxu0
      %2011 = vmatprep.mubr.f32.mxu0 0.0
      %2012 = vmatmul.mubr.f32.gmra.mrb[0].mxu0 %v1940
      %v2013 = vpop.f32.mrb[0].mxu0
      %v2014 = vadd.f32 %v1934, %v2013
      %v2015 = vpop.f32.mrb[0].mxu0
      %2016 = vdwg.mxu0
      %v2017 = vmax.f32 %v2009, 0.0
      %v2018 = vmax.f32 %v2014, 0.0
      %v2019 = vld [vmem:[%s16] sm:$0xff]
      %v2020 = vld [vmem:[%s16 + $0x8] sm:$0xff]
      %v2021 = vld [vmem:[%s16 + $0x10] sm:$0xff]
      %v2022 = vld [vmem:[%s16 + $0x18] sm:$0xff]
      %v2023 = vld [vmem:[#allocation5] sm:$0x1]
      %v2025 = vlaneseq
      %v2026 = vshrl.u32 %v2025, 7
      %v2027 = vsub.s32 0, %v2026
      %v2028 = vrot.slane %v2023, %v2027
      %v2031 = vsel %vm1653, %v2017, 0
      %v2034 = vsel %vm1653, %v2018, 0
      %2036 = vmatprep.subr.mxu0 0.0
      %2037 = vmatpush1.msra.mxu0 %v2019
      %2038 = vmatprep.subr.mxu0 0.0
      %2039 = vmatpush1.msra.mxu0 %v2020
      %2040 = vmatprep.subr.mxu0 0.0
      %2041 = vmatpush1.msra.mxu0 %v2021
      %2042 = vmatprep.subr.mxu0 0.0
      %2043 = vmatpush1.msra.mxu0 %v2022
      %2044 = vmatprep.subr.mxu0 0.0
      %2045 = vmatpush1.msra.mxu0 0.0
      %2046 = vmatprep.subr.mxu0 0.0
      %2047 = vmatpush1.msra.mxu0 0.0
      %2048 = vmatprep.subr.mxu0 0.0
      %2049 = vmatpush1.msra.mxu0 0.0
      %2050 = vmatprep.subr.mxu0 0.0
      %2051 = vmatpush1.msra.mxu0 0.0
      %2052 = vmatprep.subr.mxu0 0.0
      %2053 = vmatpush1.msra.mxu0 0.0
      %2054 = vmatprep.subr.mxu0 0.0
      %2055 = vmatpush1.msra.mxu0 0.0
      %2056 = vmatprep.subr.mxu0 0.0
      %2057 = vmatpush1.msra.mxu0 0.0
      %2058 = vmatprep.subr.mxu0 0.0
      %2059 = vmatpush1.msra.mxu0 0.0
      %2060 = vmatprep.subr.mxu0 0.0
      %2061 = vmatpush1.msra.mxu0 0.0
      %2062 = vmatprep.subr.mxu0 0.0
      %2063 = vmatpush1.msra.mxu0 0.0
      %2064 = vmatprep.subr.mxu0 0.0
      %2065 = vmatpush1.msra.mxu0 0.0
      %2066 = vmatprep.subr.mxu0 0.0
      %2067 = vmatpush1.msra.mxu0 0.0
      %2068 = vmatprep.subr.mxu0 0.0
      %2069 = vmatpush1.msra.mxu0 0.0
      %2070 = vmatprep.subr.mxu0 0.0
      %2071 = vmatpush1.msra.mxu0 0.0
      %2072 = vmatprep.subr.mxu0 0.0
      %2073 = vmatpush1.msra.mxu0 0.0
      %2074 = vmatprep.subr.mxu0 0.0
      %2075 = vmatpush1.msra.mxu0 0.0
      %2076 = vmatprep.subr.mxu0 0.0
      %2077 = vmatpush1.msra.mxu0 0.0
      %2078 = vmatprep.subr.mxu0 0.0
      %2079 = vmatpush1.msra.mxu0 0.0
      %2080 = vmatprep.subr.mxu0 0.0
      %2081 = vmatpush1.msra.mxu0 0.0
      %2082 = vmatprep.subr.mxu0 0.0
      %2083 = vmatpush1.msra.mxu0 0.0
      %2084 = vmatprep.subr.mxu0 0.0
      %2085 = vmatpush1.msra.mxu0 0.0
      %2086 = vmatprep.subr.mxu0 0.0
      %2087 = vmatpush1.msra.mxu0 0.0
      %2088 = vmatprep.subr.mxu0 0.0
      %2089 = vmatpush1.msra.mxu0 0.0
      %2090 = vmatprep.subr.mxu0 0.0
      %2091 = vmatpush1.msra.mxu0 0.0
      %2092 = vmatprep.subr.mxu0 0.0
      %2093 = vmatpush1.msra.mxu0 0.0
      %2094 = vmatprep.subr.mxu0 0.0
      %2095 = vmatpush1.msra.mxu0 0.0
      %2096 = vmatprep.subr.mxu0 0.0
      %2097 = vmatpush1.msra.mxu0 0.0
      %2098 = vmatprep.subr.mxu0 0.0
      %2099 = vmatpush1.msra.mxu0 0.0
      %2100 = vmatprep.mubr.f32.mxu0 0.0
      %2101 = vmatmul.mubr.f32.gmra.mrb[0].mxu0 %v2031
      %v2102 = vpop.f32.mrb[0].mxu0
      %v2103 = vadd.f32 %v2028, %v2102
      %v2104 = vpop.f32.mrb[0].mxu0
      %2105 = vmatprep.mubr.f32.mxu0 0.0
      %2106 = vmatmul.mubr.f32.gmra.mrb[0].mxu0 %v2034
      %v2107 = vpop.f32.mrb[0].mxu0
      %v2108 = vadd.f32 %v2028, %v2107
      %v2109 = vpop.f32.mrb[0].mxu0
      %2110 = vdwg.mxu0
      %vm2111 = vcmask 7168
      %2112 = vst.msk [vmem:[%s723] sm:$0xff] %vm2111, %v2103
      %2113 = vst.msk [vmem:[%s723 + $0x8] sm:$0xff] %vm2111, %v2108
      %s2114 = smul.u32 2, %s42
      %p2115 = scmp.lt.s32.totalorder %s41, 1
      %s2116 = scalar_select %p2115, %s41, 1
      %p2117 = scmp.lt.s32.totalorder %s2114, 3
      %s2118 = scalar_select %p2117, %s2114, 3
      %s2119 = smul.addr %s2116, 4
      %s2120 = sadd.s32 %s2118, %s2119
      %s2121 = smul.addr %s2120, 8
      %s2122 = scalar_lea.vmem %s18, %s2121
      // Predicated region
      $region96: #{dense_invariant_scale_forward.1} parent=87 // pred_check
        %p2123 = pneg %p459
      $region97: #{dense_invariant_scale_forward.1} parent=87 // pred_check_branch
        %2125 = sbr.rel (%p2123) target = $region99
      $region98: #{dense_invariant_scale_forward.1} parent=87 // pred_region
        %s2126 = smul.u32 2, %s42
      $region99: #{dense_invariant_scale_forward.1} parent=87 // pred_fallthru
        _
    $region88: #{dense_invariant_scale_forward.1} parent=5 // pred_fallthru
      _
    %p2127 = scmp.le.s32.totalorder 2, %s32
    // Predicated region
    $region100: #{dense_invariant_scale_forward.1} parent=5 // pred_check
      %p2128 = pneg %p2127
    $region101: #{dense_invariant_scale_forward.1} parent=5 // pred_check_branch
      %2130 = sbr.rel (%p2128) target = $region103
    $region102: #{dense_invariant_scale_forward.1} parent=5 // pred_region
      %s2131 = ssub.s32 %s32, 2
      // Predicated region
      $region104: #{dense_invariant_scale_forward.1} parent=102 // pred_check
        %p2132 = pneg %p465
      $region105: #{dense_invariant_scale_forward.1} parent=102 // pred_check_branch
        %2134 = sbr.rel (%p2132) target = $region107
      $region106: #{dense_invariant_scale_forward.1} parent=102 // pred_region
        %s2135 = smul.u32 2, %s44
        %p2136 = scmp.lt.s32.totalorder %s43, 1
        %s2137 = scalar_select %p2136, %s43, 1
        %p2138 = scmp.lt.s32.totalorder %s2135, 3
        %s2139 = scalar_select %p2138, %s2135, 3
        %s2140 = smul.addr %s2137, 4
        %s2141 = sadd.s32 %s2139, %s2140
        %s2142 = smul.addr %s2141, 8
        %s2143 = scalar_lea.vmem %s18, %s2142
      $region107: #{dense_invariant_scale_forward.1} parent=102 // pred_fallthru
        _
    $region103: #{dense_invariant_scale_forward.1} parent=5 // pred_fallthru
      _
  $region6: #{dense_invariant_scale_forward.1} parent=0 // loop_footer
    %s36 = sadd.s32 1, %s32
  $region7: #{dense_invariant_scale_forward.1} parent=0 // loop_footer_branch
    %31 = sbr.rel target = $region3
  $region8: #{dense_invariant_scale_forward.1} parent=0 // loop_exit
    _

</llo_original>
